<compile_context>
chip_gen: v7x
topology: tpu7x:2x2x1
jax: 0.10.0
libtpu: 0.0.40
codegen_flags: <defaults>
</compile_context>

<pallas_src>
import jax
import jax.numpy as jnp
from jax.experimental import pallas as pl
from jax.experimental.pallas import tpu as pltpu


# ------------------------------ Fused LSTM kernel ------------------------------
def make_fused_lstm_kernel(B, T, H, num_layers):
    """num_layers stacked LSTM layers + final Linear, single kernel invocation.

    Ref layout: x (T*B, D0) time-major rows, then (w_ih, w_hh, b) per layer,
    fc_w (H, C), fc_b (1, C), out (T*B, C).
    """

    def kernel(*refs):
        x_ref = refs[0]                               # (T*B, D0) time-major
        layer_refs = refs[1:1 + 3 * num_layers]       # (w_ih, w_hh, b) per layer
        fc_w_ref = refs[1 + 3 * num_layers]           # (H, C)
        fc_b_ref = refs[2 + 3 * num_layers]           # (1, C)
        out_ref = refs[3 + 3 * num_layers]            # (T*B, C)

        # Load all weights once (VMEM-resident values, hoisted out of the t-loop).
        w_ih = [layer_refs[3 * l][...] for l in range(num_layers)]
        w_hh = [layer_refs[3 * l + 1][...] for l in range(num_layers)]
        bias = [layer_refs[3 * l + 2][...] for l in range(num_layers)]

        # Hoisted layer-0 input projection: ONE batched MXU matmul over all timesteps.
        gin0 = jnp.dot(x_ref[...], w_ih[0],
                       preferred_element_type=jnp.float32) + bias[0]   # (T*B, 4H)

        # h0 = c0 = 0 per layer (matches torch.zeros in the reference forward).
        h = [jnp.zeros((B, H), jnp.float32) for _ in range(num_layers)]
        c = [jnp.zeros((B, H), jnp.float32) for _ in range(num_layers)]

        def cell(gates, c_prev):
            # Full 128-lane-width activations: 2 EUP pushes per step instead of 4/5.
            sig = jax.nn.sigmoid(gates)               # (B, 4H)
            th = jnp.tanh(gates)                      # (B, 4H)
            i_g = sig[:, 0 * H:1 * H]
            f_g = sig[:, 1 * H:2 * H]
            g_g = th[:, 2 * H:3 * H]
            o_g = sig[:, 3 * H:4 * H]
            c_new = f_g * c_prev + i_g * g_g
            h_new = o_g * jnp.tanh(c_new)
            return h_new, c_new

        # Wavefronted, statically unrolled recurrence: at each t step layer 0, then
        # layer 1, ...  Layer l's step t depends only on layer (l-1)'s h_t and its own
        # state at t-1, so the unrolled stream exposes independent dependence chains.
        outs = []                                     # top-layer h_t, time-major order
        for t in range(T):
            # Layer 0: contiguous time-major rows (static slice, no strided gather).
            gates0 = gin0[t * B:(t + 1) * B, :] + jnp.dot(
                h[0], w_hh[0], preferred_element_type=jnp.float32)      # (B, 4H)
            h[0], c[0] = cell(gates0, c[0])
            x_t = h[0]
            for l in range(1, num_layers):
                gates_l = (jnp.dot(x_t, w_ih[l], preferred_element_type=jnp.float32)
                           + bias[l]
                           + jnp.dot(h[l], w_hh[l],
                                     preferred_element_type=jnp.float32))
                h[l], c[l] = cell(gates_l, c[l])
                x_t = h[l]
            outs.append(x_t)

        # Final Linear over every timestep: one matmul, one HBM store (time-major rows).
        seq = jnp.concatenate(outs, axis=0)           # (T*B, H)
        logits = (jnp.dot(seq, fc_w_ref[...], preferred_element_type=jnp.float32)
                  + fc_b_ref[...])                    # (T*B, C)
        out_ref[...] = logits.astype(out_ref.dtype)

    return kernel


# --------------------------------- Wrapper ------------------------------------
@jax.jit
def rnn_lstm_forward(x, lstm_params, fc_w, fc_b):
    """x: (B, T, input_size) batch-first, like nn.LSTM(batch_first=True) + nn.Linear."""
    B, T, D = x.shape
    H = lstm_params[0][1].shape[0]
    C = fc_w.shape[1]
    num_layers = len(lstm_params)

    flat_params = []
    for (w_ih, w_hh, b) in lstm_params:
        flat_params += [w_ih, w_hh, b]

    # Time-major internal layout so per-step reads inside the kernel are contiguous.
    # The transpose of the tiny (B,T,D) input / (T,B,C) output happens outside the kernel.
    x_tm = jnp.transpose(x, (1, 0, 2)).reshape(T * B, D)

    vmem = pl.BlockSpec(memory_space=pltpu.MemorySpace.VMEM)
    out2d = pl.pallas_call(
        make_fused_lstm_kernel(B, T, H, num_layers),
        out_shape=jax.ShapeDtypeStruct((T * B, C), jnp.float32),
        in_specs=[vmem] * (1 + 3 * num_layers + 2),
        out_specs=vmem,
    )(x_tm, *flat_params, fc_w, fc_b)

    return jnp.transpose(out2d.reshape(T, B, C), (1, 0, 2))   # back to batch-first


# ------------------------- Deterministic param init ---------------------------
def init_params(key, input_size, hidden_size, num_layers, num_classes):
    k = 1.0 / jnp.sqrt(jnp.float32(hidden_size))
    lstm_params = []
    d_in = input_size
    for _ in range(num_layers):
        key, k1, k2, k3, k4 = jax.random.split(key, 5)
        w_ih = jax.random.uniform(k1, (d_in, 4 * hidden_size), jnp.float32, -k, k)
        w_hh = jax.random.uniform(k2, (hidden_size, 4 * hidden_size), jnp.float32, -k, k)
        b_ih = jax.random.uniform(k3, (4 * hidden_size,), jnp.float32, -k, k)
        b_hh = jax.random.uniform(k4, (4 * hidden_size,), jnp.float32, -k, k)
        b = (b_ih + b_hh).reshape(1, 4 * hidden_size)
        lstm_params.append((w_ih, w_hh, b))
        d_in = hidden_size
    key, k5, k6 = jax.random.split(key, 3)
    kf = 1.0 / jnp.sqrt(jnp.float32(hidden_size))
    fc_w = jax.random.uniform(k5, (hidden_size, num_classes), jnp.float32, -kf, kf)
    fc_b = jax.random.uniform(k6, (1, num_classes), jnp.float32, -kf, kf)
    return lstm_params, fc_w, fc_b


# ------------------------------ Pure-JAX reference -----------------------------
def reference_forward(x, lstm_params, fc_w, fc_b):
    B, T, _ = x.shape
    seq = x
    for (w_ih, w_hh, b) in lstm_params:
        H = w_hh.shape[0]

        def step(carry, x_t, w_ih=w_ih, w_hh=w_hh, b=b, H=H):
            h, c = carry
            gates = x_t @ w_ih + h @ w_hh + b[0]
            i = jax.nn.sigmoid(gates[:, 0 * H:1 * H])
            f = jax.nn.sigmoid(gates[:, 1 * H:2 * H])
            g = jnp.tanh(gates[:, 2 * H:3 * H])
            o = jax.nn.sigmoid(gates[:, 3 * H:4 * H])
            c = f * c + i * g
            h = o * jnp.tanh(c)
            return (h, c), h

        init = (jnp.zeros((B, H), jnp.float32), jnp.zeros((B, H), jnp.float32))
        _, hs = jax.lax.scan(step, init, jnp.transpose(seq, (1, 0, 2)))
        seq = jnp.transpose(hs, (1, 0, 2))
    return seq @ fc_w + fc_b[0]


# ----------------------------------- Main --------------------------------------
if __name__ == "__main__":
    # Matches RNN_LSTM(num_layers=2, hidden_size=32, bidirectional=False, num_classes=2)
    # with the resnet18/34 branch (input_size=512).
    # TODO(synk): bidirectional=True path not implemented (module default is False).
    B, T = 2, 8
    INPUT_SIZE = 512
    HIDDEN = 32
    NUM_LAYERS = 2
    NUM_CLASSES = 2

    key = jax.random.PRNGKey(0)
    key, kx = jax.random.split(key)
    x = jax.random.normal(kx, (B, T, INPUT_SIZE), jnp.float32)

    lstm_params, fc_w, fc_b = init_params(key, INPUT_SIZE, HIDDEN, NUM_LAYERS, NUM_CLASSES)

    out = rnn_lstm_forward(x, lstm_params, fc_w, fc_b)
    out = jax.block_until_ready(out)

    assert out.shape == (B, T, NUM_CLASSES), out.shape

    ref = reference_forward(x, lstm_params, fc_w, fc_b)
    assert jnp.allclose(out, ref, atol=2e-4, rtol=2e-4), \
        float(jnp.max(jnp.abs(out - ref)))

    print("KERNEL_OK")
</pallas_src>

<mosaic_0001>
module attributes {stable_mosaic.version = 11 : i64} {
  func.func @kernel(%arg0: memref<16x512xf32, #tpu.memory_space<vmem>>, %arg1: memref<512x128xf32, #tpu.memory_space<vmem>>, %arg2: memref<32x128xf32, #tpu.memory_space<vmem>>, %arg3: memref<1x128xf32, #tpu.memory_space<vmem>>, %arg4: memref<32x128xf32, #tpu.memory_space<vmem>>, %arg5: memref<32x128xf32, #tpu.memory_space<vmem>>, %arg6: memref<1x128xf32, #tpu.memory_space<vmem>>, %arg7: memref<32x2xf32, #tpu.memory_space<vmem>>, %arg8: memref<1x2xf32, #tpu.memory_space<vmem>>, %arg9: memref<16x2xf32, #tpu.memory_space<vmem>>) attributes {dimension_semantics = [], scalar_prefetch = 0 : i64, scratch_operands = 0 : i64, tpu.core_type = #tpu.core_type<tc>} {
    %c0 = arith.constant 0 : index
    %c0_0 = arith.constant 0 : index
    %0 = vector.load %arg1[%c0, %c0_0] : memref<512x128xf32, #tpu.memory_space<vmem>>, vector<512x128xf32>
    %c0_1 = arith.constant 0 : index
    %c0_2 = arith.constant 0 : index
    %1 = vector.load %arg4[%c0_1, %c0_2] : memref<32x128xf32, #tpu.memory_space<vmem>>, vector<32x128xf32>
    %c0_3 = arith.constant 0 : index
    %c0_4 = arith.constant 0 : index
    %2 = vector.load %arg2[%c0_3, %c0_4] : memref<32x128xf32, #tpu.memory_space<vmem>>, vector<32x128xf32>
    %c0_5 = arith.constant 0 : index
    %c0_6 = arith.constant 0 : index
    %3 = vector.load %arg5[%c0_5, %c0_6] : memref<32x128xf32, #tpu.memory_space<vmem>>, vector<32x128xf32>
    %c0_7 = arith.constant 0 : index
    %c0_8 = arith.constant 0 : index
    %4 = vector.load %arg3[%c0_7, %c0_8] : memref<1x128xf32, #tpu.memory_space<vmem>>, vector<1x128xf32>
    %c0_9 = arith.constant 0 : index
    %c0_10 = arith.constant 0 : index
    %5 = vector.load %arg6[%c0_9, %c0_10] : memref<1x128xf32, #tpu.memory_space<vmem>>, vector<1x128xf32>
    %c0_11 = arith.constant 0 : index
    %c0_12 = arith.constant 0 : index
    %6 = vector.load %arg0[%c0_11, %c0_12] : memref<16x512xf32, #tpu.memory_space<vmem>>, vector<16x512xf32>
    %cst = arith.constant dense<0.000000e+00> : vector<16x128xf32>
    %7 = tpu.matmul %6, %0, %cst {dimension_numbers = #tpu.dot_dimension_numbers<[1], [0], [0], [1], [0, 0, 1, 1], [], []>} : vector<16x512xf32>, vector<512x128xf32>, vector<16x128xf32> -> vector<16x128xf32>
    %8 = vector.broadcast %4 : vector<1x128xf32> to vector<16x128xf32>
    %9 = arith.addf %7, %8 : vector<16x128xf32>
    %cst_13 = arith.constant 0.000000e+00 : f32
    %10 = vector.broadcast %cst_13 : f32 to vector<2x32xf32>
    %cst_14 = arith.constant 0.000000e+00 : f32
    %11 = vector.broadcast %cst_14 : f32 to vector<2x32xf32>
    %cst_15 = arith.constant 0.000000e+00 : f32
    %12 = vector.broadcast %cst_15 : f32 to vector<2x32xf32>
    %cst_16 = arith.constant 0.000000e+00 : f32
    %13 = vector.broadcast %cst_16 : f32 to vector<2x32xf32>
    %14 = vector.extract_strided_slice %9 {offsets = [0, 0], sizes = [2, 128], strides = [1, 1]} : vector<16x128xf32> to vector<2x128xf32>
    %cst_17 = arith.constant dense<0.000000e+00> : vector<2x128xf32>
    %15 = tpu.matmul %10, %2, %cst_17 {dimension_numbers = #tpu.dot_dimension_numbers<[1], [0], [0], [1], [0, 0, 1, 1], [], []>} : vector<2x32xf32>, vector<32x128xf32>, vector<2x128xf32> -> vector<2x128xf32>
    %16 = arith.addf %14, %15 : vector<2x128xf32>
    %17 = arith.negf %16 : vector<2x128xf32>
    %18 = math.exp %17 : vector<2x128xf32>
    %cst_18 = arith.constant 1.000000e+00 : f32
    %19 = vector.broadcast %cst_18 : f32 to vector<2x128xf32>
    %20 = arith.addf %19, %18 : vector<2x128xf32>
    %21 = arith.divf %19, %20 : vector<2x128xf32>
    %22 = math.tanh %16 : vector<2x128xf32>
    %23 = vector.extract_strided_slice %21 {offsets = [0, 0], sizes = [2, 32], strides = [1, 1]} : vector<2x128xf32> to vector<2x32xf32>
    %24 = vector.extract_strided_slice %21 {offsets = [0, 32], sizes = [2, 32], strides = [1, 1]} : vector<2x128xf32> to vector<2x32xf32>
    %25 = vector.extract_strided_slice %22 {offsets = [0, 64], sizes = [2, 32], strides = [1, 1]} : vector<2x128xf32> to vector<2x32xf32>
    %26 = vector.extract_strided_slice %21 {offsets = [0, 96], sizes = [2, 32], strides = [1, 1]} : vector<2x128xf32> to vector<2x32xf32>
    %27 = arith.mulf %24, %12 : vector<2x32xf32>
    %28 = arith.mulf %23, %25 : vector<2x32xf32>
    %29 = arith.addf %27, %28 : vector<2x32xf32>
    %30 = math.tanh %29 : vector<2x32xf32>
    %31 = arith.mulf %26, %30 : vector<2x32xf32>
    %cst_19 = arith.constant dense<0.000000e+00> : vector<2x128xf32>
    %32 = tpu.matmul %31, %1, %cst_19 {dimension_numbers = #tpu.dot_dimension_numbers<[1], [0], [0], [1], [0, 0, 1, 1], [], []>} : vector<2x32xf32>, vector<32x128xf32>, vector<2x128xf32> -> vector<2x128xf32>
    %33 = vector.broadcast %5 : vector<1x128xf32> to vector<2x128xf32>
    %34 = arith.addf %32, %33 : vector<2x128xf32>
    %cst_20 = arith.constant dense<0.000000e+00> : vector<2x128xf32>
    %35 = tpu.matmul %11, %3, %cst_20 {dimension_numbers = #tpu.dot_dimension_numbers<[1], [0], [0], [1], [0, 0, 1, 1], [], []>} : vector<2x32xf32>, vector<32x128xf32>, vector<2x128xf32> -> vector<2x128xf32>
    %36 = arith.addf %34, %35 : vector<2x128xf32>
    %37 = arith.negf %36 : vector<2x128xf32>
    %38 = math.exp %37 : vector<2x128xf32>
    %cst_21 = arith.constant 1.000000e+00 : f32
    %39 = vector.broadcast %cst_21 : f32 to vector<2x128xf32>
    %40 = arith.addf %39, %38 : vector<2x128xf32>
    %41 = arith.divf %39, %40 : vector<2x128xf32>
    %42 = math.tanh %36 : vector<2x128xf32>
    %43 = vector.extract_strided_slice %41 {offsets = [0, 0], sizes = [2, 32], strides = [1, 1]} : vector<2x128xf32> to vector<2x32xf32>
    %44 = vector.extract_strided_slice %41 {offsets = [0, 32], sizes = [2, 32], strides = [1, 1]} : vector<2x128xf32> to vector<2x32xf32>
    %45 = vector.extract_strided_slice %42 {offsets = [0, 64], sizes = [2, 32], strides = [1, 1]} : vector<2x128xf32> to vector<2x32xf32>
    %46 = vector.extract_strided_slice %41 {offsets = [0, 96], sizes = [2, 32], strides = [1, 1]} : vector<2x128xf32> to vector<2x32xf32>
    %47 = arith.mulf %44, %13 : vector<2x32xf32>
    %48 = arith.mulf %43, %45 : vector<2x32xf32>
    %49 = arith.addf %47, %48 : vector<2x32xf32>
    %50 = math.tanh %49 : vector<2x32xf32>
    %51 = arith.mulf %46, %50 : vector<2x32xf32>
    %52 = vector.extract_strided_slice %9 {offsets = [2, 0], sizes = [2, 128], strides = [1, 1]} : vector<16x128xf32> to vector<2x128xf32>
    %cst_22 = arith.constant dense<0.000000e+00> : vector<2x128xf32>
    %53 = tpu.matmul %31, %2, %cst_22 {dimension_numbers = #tpu.dot_dimension_numbers<[1], [0], [0], [1], [0, 0, 1, 1], [], []>} : vector<2x32xf32>, vector<32x128xf32>, vector<2x128xf32> -> vector<2x128xf32>
    %54 = arith.addf %52, %53 : vector<2x128xf32>
    %55 = arith.negf %54 : vector<2x128xf32>
    %56 = math.exp %55 : vector<2x128xf32>
    %cst_23 = arith.constant 1.000000e+00 : f32
    %57 = vector.broadcast %cst_23 : f32 to vector<2x128xf32>
    %58 = arith.addf %57, %56 : vector<2x128xf32>
    %59 = arith.divf %57, %58 : vector<2x128xf32>
    %60 = math.tanh %54 : vector<2x128xf32>
    %61 = vector.extract_strided_slice %59 {offsets = [0, 0], sizes = [2, 32], strides = [1, 1]} : vector<2x128xf32> to vector<2x32xf32>
    %62 = vector.extract_strided_slice %59 {offsets = [0, 32], sizes = [2, 32], strides = [1, 1]} : vector<2x128xf32> to vector<2x32xf32>
    %63 = vector.extract_strided_slice %60 {offsets = [0, 64], sizes = [2, 32], strides = [1, 1]} : vector<2x128xf32> to vector<2x32xf32>
    %64 = vector.extract_strided_slice %59 {offsets = [0, 96], sizes = [2, 32], strides = [1, 1]} : vector<2x128xf32> to vector<2x32xf32>
    %65 = arith.mulf %62, %29 : vector<2x32xf32>
    %66 = arith.mulf %61, %63 : vector<2x32xf32>
    %67 = arith.addf %65, %66 : vector<2x32xf32>
    %68 = math.tanh %67 : vector<2x32xf32>
    %69 = arith.mulf %64, %68 : vector<2x32xf32>
    %cst_24 = arith.constant dense<0.000000e+00> : vector<2x128xf32>
    %70 = tpu.matmul %69, %1, %cst_24 {dimension_numbers = #tpu.dot_dimension_numbers<[1], [0], [0], [1], [0, 0, 1, 1], [], []>} : vector<2x32xf32>, vector<32x128xf32>, vector<2x128xf32> -> vector<2x128xf32>
    %71 = vector.broadcast %5 : vector<1x128xf32> to vector<2x128xf32>
    %72 = arith.addf %70, %71 : vector<2x128xf32>
    %cst_25 = arith.constant dense<0.000000e+00> : vector<2x128xf32>
    %73 = tpu.matmul %51, %3, %cst_25 {dimension_numbers = #tpu.dot_dimension_numbers<[1], [0], [0], [1], [0, 0, 1, 1], [], []>} : vector<2x32xf32>, vector<32x128xf32>, vector<2x128xf32> -> vector<2x128xf32>
    %74 = arith.addf %72, %73 : vector<2x128xf32>
    %75 = arith.negf %74 : vector<2x128xf32>
    %76 = math.exp %75 : vector<2x128xf32>
    %cst_26 = arith.constant 1.000000e+00 : f32
    %77 = vector.broadcast %cst_26 : f32 to vector<2x128xf32>
    %78 = arith.addf %77, %76 : vector<2x128xf32>
    %79 = arith.divf %77, %78 : vector<2x128xf32>
    %80 = math.tanh %74 : vector<2x128xf32>
    %81 = vector.extract_strided_slice %79 {offsets = [0, 0], sizes = [2, 32], strides = [1, 1]} : vector<2x128xf32> to vector<2x32xf32>
    %82 = vector.extract_strided_slice %79 {offsets = [0, 32], sizes = [2, 32], strides = [1, 1]} : vector<2x128xf32> to vector<2x32xf32>
    %83 = vector.extract_strided_slice %80 {offsets = [0, 64], sizes = [2, 32], strides = [1, 1]} : vector<2x128xf32> to vector<2x32xf32>
    %84 = vector.extract_strided_slice %79 {offsets = [0, 96], sizes = [2, 32], strides = [1, 1]} : vector<2x128xf32> to vector<2x32xf32>
    %85 = arith.mulf %82, %49 : vector<2x32xf32>
    %86 = arith.mulf %81, %83 : vector<2x32xf32>
    %87 = arith.addf %85, %86 : vector<2x32xf32>
    %88 = math.tanh %87 : vector<2x32xf32>
    %89 = arith.mulf %84, %88 : vector<2x32xf32>
    %90 = vector.extract_strided_slice %9 {offsets = [4, 0], sizes = [2, 128], strides = [1, 1]} : vector<16x128xf32> to vector<2x128xf32>
    %cst_27 = arith.constant dense<0.000000e+00> : vector<2x128xf32>
    %91 = tpu.matmul %69, %2, %cst_27 {dimension_numbers = #tpu.dot_dimension_numbers<[1], [0], [0], [1], [0, 0, 1, 1], [], []>} : vector<2x32xf32>, vector<32x128xf32>, vector<2x128xf32> -> vector<2x128xf32>
    %92 = arith.addf %90, %91 : vector<2x128xf32>
    %93 = arith.negf %92 : vector<2x128xf32>
    %94 = math.exp %93 : vector<2x128xf32>
    %cst_28 = arith.constant 1.000000e+00 : f32
    %95 = vector.broadcast %cst_28 : f32 to vector<2x128xf32>
    %96 = arith.addf %95, %94 : vector<2x128xf32>
    %97 = arith.divf %95, %96 : vector<2x128xf32>
    %98 = math.tanh %92 : vector<2x128xf32>
    %99 = vector.extract_strided_slice %97 {offsets = [0, 0], sizes = [2, 32], strides = [1, 1]} : vector<2x128xf32> to vector<2x32xf32>
    %100 = vector.extract_strided_slice %97 {offsets = [0, 32], sizes = [2, 32], strides = [1, 1]} : vector<2x128xf32> to vector<2x32xf32>
    %101 = vector.extract_strided_slice %98 {offsets = [0, 64], sizes = [2, 32], strides = [1, 1]} : vector<2x128xf32> to vector<2x32xf32>
    %102 = vector.extract_strided_slice %97 {offsets = [0, 96], sizes = [2, 32], strides = [1, 1]} : vector<2x128xf32> to vector<2x32xf32>
    %103 = arith.mulf %100, %67 : vector<2x32xf32>
    %104 = arith.mulf %99, %101 : vector<2x32xf32>
    %105 = arith.addf %103, %104 : vector<2x32xf32>
    %106 = math.tanh %105 : vector<2x32xf32>
    %107 = arith.mulf %102, %106 : vector<2x32xf32>
    %cst_29 = arith.constant dense<0.000000e+00> : vector<2x128xf32>
    %108 = tpu.matmul %107, %1, %cst_29 {dimension_numbers = #tpu.dot_dimension_numbers<[1], [0], [0], [1], [0, 0, 1, 1], [], []>} : vector<2x32xf32>, vector<32x128xf32>, vector<2x128xf32> -> vector<2x128xf32>
    %109 = vector.broadcast %5 : vector<1x128xf32> to vector<2x128xf32>
    %110 = arith.addf %108, %109 : vector<2x128xf32>
    %cst_30 = arith.constant dense<0.000000e+00> : vector<2x128xf32>
    %111 = tpu.matmul %89, %3, %cst_30 {dimension_numbers = #tpu.dot_dimension_numbers<[1], [0], [0], [1], [0, 0, 1, 1], [], []>} : vector<2x32xf32>, vector<32x128xf32>, vector<2x128xf32> -> vector<2x128xf32>
    %112 = arith.addf %110, %111 : vector<2x128xf32>
    %113 = arith.negf %112 : vector<2x128xf32>
    %114 = math.exp %113 : vector<2x128xf32>
    %cst_31 = arith.constant 1.000000e+00 : f32
    %115 = vector.broadcast %cst_31 : f32 to vector<2x128xf32>
    %116 = arith.addf %115, %114 : vector<2x128xf32>
    %117 = arith.divf %115, %116 : vector<2x128xf32>
    %118 = math.tanh %112 : vector<2x128xf32>
    %119 = vector.extract_strided_slice %117 {offsets = [0, 0], sizes = [2, 32], strides = [1, 1]} : vector<2x128xf32> to vector<2x32xf32>
    %120 = vector.extract_strided_slice %117 {offsets = [0, 32], sizes = [2, 32], strides = [1, 1]} : vector<2x128xf32> to vector<2x32xf32>
    %121 = vector.extract_strided_slice %118 {offsets = [0, 64], sizes = [2, 32], strides = [1, 1]} : vector<2x128xf32> to vector<2x32xf32>
    %122 = vector.extract_strided_slice %117 {offsets = [0, 96], sizes = [2, 32], strides = [1, 1]} : vector<2x128xf32> to vector<2x32xf32>
    %123 = arith.mulf %120, %87 : vector<2x32xf32>
    %124 = arith.mulf %119, %121 : vector<2x32xf32>
    %125 = arith.addf %123, %124 : vector<2x32xf32>
    %126 = math.tanh %125 : vector<2x32xf32>
    %127 = arith.mulf %122, %126 : vector<2x32xf32>
    %128 = vector.extract_strided_slice %9 {offsets = [6, 0], sizes = [2, 128], strides = [1, 1]} : vector<16x128xf32> to vector<2x128xf32>
    %cst_32 = arith.constant dense<0.000000e+00> : vector<2x128xf32>
    %129 = tpu.matmul %107, %2, %cst_32 {dimension_numbers = #tpu.dot_dimension_numbers<[1], [0], [0], [1], [0, 0, 1, 1], [], []>} : vector<2x32xf32>, vector<32x128xf32>, vector<2x128xf32> -> vector<2x128xf32>
    %130 = arith.addf %128, %129 : vector<2x128xf32>
    %131 = arith.negf %130 : vector<2x128xf32>
    %132 = math.exp %131 : vector<2x128xf32>
    %cst_33 = arith.constant 1.000000e+00 : f32
    %133 = vector.broadcast %cst_33 : f32 to vector<2x128xf32>
    %134 = arith.addf %133, %132 : vector<2x128xf32>
    %135 = arith.divf %133, %134 : vector<2x128xf32>
    %136 = math.tanh %130 : vector<2x128xf32>
    %137 = vector.extract_strided_slice %135 {offsets = [0, 0], sizes = [2, 32], strides = [1, 1]} : vector<2x128xf32> to vector<2x32xf32>
    %138 = vector.extract_strided_slice %135 {offsets = [0, 32], sizes = [2, 32], strides = [1, 1]} : vector<2x128xf32> to vector<2x32xf32>
    %139 = vector.extract_strided_slice %136 {offsets = [0, 64], sizes = [2, 32], strides = [1, 1]} : vector<2x128xf32> to vector<2x32xf32>
    %140 = vector.extract_strided_slice %135 {offsets = [0, 96], sizes = [2, 32], strides = [1, 1]} : vector<2x128xf32> to vector<2x32xf32>
    %141 = arith.mulf %138, %105 : vector<2x32xf32>
    %142 = arith.mulf %137, %139 : vector<2x32xf32>
    %143 = arith.addf %141, %142 : vector<2x32xf32>
    %144 = math.tanh %143 : vector<2x32xf32>
    %145 = arith.mulf %140, %144 : vector<2x32xf32>
    %cst_34 = arith.constant dense<0.000000e+00> : vector<2x128xf32>
    %146 = tpu.matmul %145, %1, %cst_34 {dimension_numbers = #tpu.dot_dimension_numbers<[1], [0], [0], [1], [0, 0, 1, 1], [], []>} : vector<2x32xf32>, vector<32x128xf32>, vector<2x128xf32> -> vector<2x128xf32>
    %147 = vector.broadcast %5 : vector<1x128xf32> to vector<2x128xf32>
    %148 = arith.addf %146, %147 : vector<2x128xf32>
    %cst_35 = arith.constant dense<0.000000e+00> : vector<2x128xf32>
    %149 = tpu.matmul %127, %3, %cst_35 {dimension_numbers = #tpu.dot_dimension_numbers<[1], [0], [0], [1], [0, 0, 1, 1], [], []>} : vector<2x32xf32>, vector<32x128xf32>, vector<2x128xf32> -> vector<2x128xf32>
    %150 = arith.addf %148, %149 : vector<2x128xf32>
    %151 = arith.negf %150 : vector<2x128xf32>
    %152 = math.exp %151 : vector<2x128xf32>
    %cst_36 = arith.constant 1.000000e+00 : f32
    %153 = vector.broadcast %cst_36 : f32 to vector<2x128xf32>
    %154 = arith.addf %153, %152 : vector<2x128xf32>
    %155 = arith.divf %153, %154 : vector<2x128xf32>
    %156 = math.tanh %150 : vector<2x128xf32>
    %157 = vector.extract_strided_slice %155 {offsets = [0, 0], sizes = [2, 32], strides = [1, 1]} : vector<2x128xf32> to vector<2x32xf32>
    %158 = vector.extract_strided_slice %155 {offsets = [0, 32], sizes = [2, 32], strides = [1, 1]} : vector<2x128xf32> to vector<2x32xf32>
    %159 = vector.extract_strided_slice %156 {offsets = [0, 64], sizes = [2, 32], strides = [1, 1]} : vector<2x128xf32> to vector<2x32xf32>
    %160 = vector.extract_strided_slice %155 {offsets = [0, 96], sizes = [2, 32], strides = [1, 1]} : vector<2x128xf32> to vector<2x32xf32>
    %161 = arith.mulf %158, %125 : vector<2x32xf32>
    %162 = arith.mulf %157, %159 : vector<2x32xf32>
    %163 = arith.addf %161, %162 : vector<2x32xf32>
    %164 = math.tanh %163 : vector<2x32xf32>
    %165 = arith.mulf %160, %164 : vector<2x32xf32>
    %166 = vector.extract_strided_slice %9 {offsets = [8, 0], sizes = [2, 128], strides = [1, 1]} : vector<16x128xf32> to vector<2x128xf32>
    %cst_37 = arith.constant dense<0.000000e+00> : vector<2x128xf32>
    %167 = tpu.matmul %145, %2, %cst_37 {dimension_numbers = #tpu.dot_dimension_numbers<[1], [0], [0], [1], [0, 0, 1, 1], [], []>} : vector<2x32xf32>, vector<32x128xf32>, vector<2x128xf32> -> vector<2x128xf32>
    %168 = arith.addf %166, %167 : vector<2x128xf32>
    %169 = arith.negf %168 : vector<2x128xf32>
    %170 = math.exp %169 : vector<2x128xf32>
    %cst_38 = arith.constant 1.000000e+00 : f32
    %171 = vector.broadcast %cst_38 : f32 to vector<2x128xf32>
    %172 = arith.addf %171, %170 : vector<2x128xf32>
    %173 = arith.divf %171, %172 : vector<2x128xf32>
    %174 = math.tanh %168 : vector<2x128xf32>
    %175 = vector.extract_strided_slice %173 {offsets = [0, 0], sizes = [2, 32], strides = [1, 1]} : vector<2x128xf32> to vector<2x32xf32>
    %176 = vector.extract_strided_slice %173 {offsets = [0, 32], sizes = [2, 32], strides = [1, 1]} : vector<2x128xf32> to vector<2x32xf32>
    %177 = vector.extract_strided_slice %174 {offsets = [0, 64], sizes = [2, 32], strides = [1, 1]} : vector<2x128xf32> to vector<2x32xf32>
    %178 = vector.extract_strided_slice %173 {offsets = [0, 96], sizes = [2, 32], strides = [1, 1]} : vector<2x128xf32> to vector<2x32xf32>
    %179 = arith.mulf %176, %143 : vector<2x32xf32>
    %180 = arith.mulf %175, %177 : vector<2x32xf32>
    %181 = arith.addf %179, %180 : vector<2x32xf32>
    %182 = math.tanh %181 : vector<2x32xf32>
    %183 = arith.mulf %178, %182 : vector<2x32xf32>
    %cst_39 = arith.constant dense<0.000000e+00> : vector<2x128xf32>
    %184 = tpu.matmul %183, %1, %cst_39 {dimension_numbers = #tpu.dot_dimension_numbers<[1], [0], [0], [1], [0, 0, 1, 1], [], []>} : vector<2x32xf32>, vector<32x128xf32>, vector<2x128xf32> -> vector<2x128xf32>
    %185 = vector.broadcast %5 : vector<1x128xf32> to vector<2x128xf32>
    %186 = arith.addf %184, %185 : vector<2x128xf32>
    %cst_40 = arith.constant dense<0.000000e+00> : vector<2x128xf32>
    %187 = tpu.matmul %165, %3, %cst_40 {dimension_numbers = #tpu.dot_dimension_numbers<[1], [0], [0], [1], [0, 0, 1, 1], [], []>} : vector<2x32xf32>, vector<32x128xf32>, vector<2x128xf32> -> vector<2x128xf32>
    %188 = arith.addf %186, %187 : vector<2x128xf32>
    %189 = arith.negf %188 : vector<2x128xf32>
    %190 = math.exp %189 : vector<2x128xf32>
    %cst_41 = arith.constant 1.000000e+00 : f32
    %191 = vector.broadcast %cst_41 : f32 to vector<2x128xf32>
    %192 = arith.addf %191, %190 : vector<2x128xf32>
    %193 = arith.divf %191, %192 : vector<2x128xf32>
    %194 = math.tanh %188 : vector<2x128xf32>
    %195 = vector.extract_strided_slice %193 {offsets = [0, 0], sizes = [2, 32], strides = [1, 1]} : vector<2x128xf32> to vector<2x32xf32>
    %196 = vector.extract_strided_slice %193 {offsets = [0, 32], sizes = [2, 32], strides = [1, 1]} : vector<2x128xf32> to vector<2x32xf32>
    %197 = vector.extract_strided_slice %194 {offsets = [0, 64], sizes = [2, 32], strides = [1, 1]} : vector<2x128xf32> to vector<2x32xf32>
    %198 = vector.extract_strided_slice %193 {offsets = [0, 96], sizes = [2, 32], strides = [1, 1]} : vector<2x128xf32> to vector<2x32xf32>
    %199 = arith.mulf %196, %163 : vector<2x32xf32>
    %200 = arith.mulf %195, %197 : vector<2x32xf32>
    %201 = arith.addf %199, %200 : vector<2x32xf32>
    %202 = math.tanh %201 : vector<2x32xf32>
    %203 = arith.mulf %198, %202 : vector<2x32xf32>
    %204 = vector.extract_strided_slice %9 {offsets = [10, 0], sizes = [2, 128], strides = [1, 1]} : vector<16x128xf32> to vector<2x128xf32>
    %cst_42 = arith.constant dense<0.000000e+00> : vector<2x128xf32>
    %205 = tpu.matmul %183, %2, %cst_42 {dimension_numbers = #tpu.dot_dimension_numbers<[1], [0], [0], [1], [0, 0, 1, 1], [], []>} : vector<2x32xf32>, vector<32x128xf32>, vector<2x128xf32> -> vector<2x128xf32>
    %206 = arith.addf %204, %205 : vector<2x128xf32>
    %207 = arith.negf %206 : vector<2x128xf32>
    %208 = math.exp %207 : vector<2x128xf32>
    %cst_43 = arith.constant 1.000000e+00 : f32
    %209 = vector.broadcast %cst_43 : f32 to vector<2x128xf32>
    %210 = arith.addf %209, %208 : vector<2x128xf32>
    %211 = arith.divf %209, %210 : vector<2x128xf32>
    %212 = math.tanh %206 : vector<2x128xf32>
    %213 = vector.extract_strided_slice %211 {offsets = [0, 0], sizes = [2, 32], strides = [1, 1]} : vector<2x128xf32> to vector<2x32xf32>
    %214 = vector.extract_strided_slice %211 {offsets = [0, 32], sizes = [2, 32], strides = [1, 1]} : vector<2x128xf32> to vector<2x32xf32>
    %215 = vector.extract_strided_slice %212 {offsets = [0, 64], sizes = [2, 32], strides = [1, 1]} : vector<2x128xf32> to vector<2x32xf32>
    %216 = vector.extract_strided_slice %211 {offsets = [0, 96], sizes = [2, 32], strides = [1, 1]} : vector<2x128xf32> to vector<2x32xf32>
    %217 = arith.mulf %214, %181 : vector<2x32xf32>
    %218 = arith.mulf %213, %215 : vector<2x32xf32>
    %219 = arith.addf %217, %218 : vector<2x32xf32>
    %220 = math.tanh %219 : vector<2x32xf32>
    %221 = arith.mulf %216, %220 : vector<2x32xf32>
    %cst_44 = arith.constant dense<0.000000e+00> : vector<2x128xf32>
    %222 = tpu.matmul %221, %1, %cst_44 {dimension_numbers = #tpu.dot_dimension_numbers<[1], [0], [0], [1], [0, 0, 1, 1], [], []>} : vector<2x32xf32>, vector<32x128xf32>, vector<2x128xf32> -> vector<2x128xf32>
    %223 = vector.broadcast %5 : vector<1x128xf32> to vector<2x128xf32>
    %224 = arith.addf %222, %223 : vector<2x128xf32>
    %cst_45 = arith.constant dense<0.000000e+00> : vector<2x128xf32>
    %225 = tpu.matmul %203, %3, %cst_45 {dimension_numbers = #tpu.dot_dimension_numbers<[1], [0], [0], [1], [0, 0, 1, 1], [], []>} : vector<2x32xf32>, vector<32x128xf32>, vector<2x128xf32> -> vector<2x128xf32>
    %226 = arith.addf %224, %225 : vector<2x128xf32>
    %227 = arith.negf %226 : vector<2x128xf32>
    %228 = math.exp %227 : vector<2x128xf32>
    %cst_46 = arith.constant 1.000000e+00 : f32
    %229 = vector.broadcast %cst_46 : f32 to vector<2x128xf32>
    %230 = arith.addf %229, %228 : vector<2x128xf32>
    %231 = arith.divf %229, %230 : vector<2x128xf32>
    %232 = math.tanh %226 : vector<2x128xf32>
    %233 = vector.extract_strided_slice %231 {offsets = [0, 0], sizes = [2, 32], strides = [1, 1]} : vector<2x128xf32> to vector<2x32xf32>
    %234 = vector.extract_strided_slice %231 {offsets = [0, 32], sizes = [2, 32], strides = [1, 1]} : vector<2x128xf32> to vector<2x32xf32>
    %235 = vector.extract_strided_slice %232 {offsets = [0, 64], sizes = [2, 32], strides = [1, 1]} : vector<2x128xf32> to vector<2x32xf32>
    %236 = vector.extract_strided_slice %231 {offsets = [0, 96], sizes = [2, 32], strides = [1, 1]} : vector<2x128xf32> to vector<2x32xf32>
    %237 = arith.mulf %234, %201 : vector<2x32xf32>
    %238 = arith.mulf %233, %235 : vector<2x32xf32>
    %239 = arith.addf %237, %238 : vector<2x32xf32>
    %240 = math.tanh %239 : vector<2x32xf32>
    %241 = arith.mulf %236, %240 : vector<2x32xf32>
    %242 = vector.extract_strided_slice %9 {offsets = [12, 0], sizes = [2, 128], strides = [1, 1]} : vector<16x128xf32> to vector<2x128xf32>
    %cst_47 = arith.constant dense<0.000000e+00> : vector<2x128xf32>
    %243 = tpu.matmul %221, %2, %cst_47 {dimension_numbers = #tpu.dot_dimension_numbers<[1], [0], [0], [1], [0, 0, 1, 1], [], []>} : vector<2x32xf32>, vector<32x128xf32>, vector<2x128xf32> -> vector<2x128xf32>
    %244 = arith.addf %242, %243 : vector<2x128xf32>
    %245 = arith.negf %244 : vector<2x128xf32>
    %246 = math.exp %245 : vector<2x128xf32>
    %cst_48 = arith.constant 1.000000e+00 : f32
    %247 = vector.broadcast %cst_48 : f32 to vector<2x128xf32>
    %248 = arith.addf %247, %246 : vector<2x128xf32>
    %249 = arith.divf %247, %248 : vector<2x128xf32>
    %250 = math.tanh %244 : vector<2x128xf32>
    %251 = vector.extract_strided_slice %249 {offsets = [0, 0], sizes = [2, 32], strides = [1, 1]} : vector<2x128xf32> to vector<2x32xf32>
    %252 = vector.extract_strided_slice %249 {offsets = [0, 32], sizes = [2, 32], strides = [1, 1]} : vector<2x128xf32> to vector<2x32xf32>
    %253 = vector.extract_strided_slice %250 {offsets = [0, 64], sizes = [2, 32], strides = [1, 1]} : vector<2x128xf32> to vector<2x32xf32>
    %254 = vector.extract_strided_slice %249 {offsets = [0, 96], sizes = [2, 32], strides = [1, 1]} : vector<2x128xf32> to vector<2x32xf32>
    %255 = arith.mulf %252, %219 : vector<2x32xf32>
    %256 = arith.mulf %251, %253 : vector<2x32xf32>
    %257 = arith.addf %255, %256 : vector<2x32xf32>
    %258 = math.tanh %257 : vector<2x32xf32>
    %259 = arith.mulf %254, %258 : vector<2x32xf32>
    %cst_49 = arith.constant dense<0.000000e+00> : vector<2x128xf32>
    %260 = tpu.matmul %259, %1, %cst_49 {dimension_numbers = #tpu.dot_dimension_numbers<[1], [0], [0], [1], [0, 0, 1, 1], [], []>} : vector<2x32xf32>, vector<32x128xf32>, vector<2x128xf32> -> vector<2x128xf32>
    %261 = vector.broadcast %5 : vector<1x128xf32> to vector<2x128xf32>
    %262 = arith.addf %260, %261 : vector<2x128xf32>
    %cst_50 = arith.constant dense<0.000000e+00> : vector<2x128xf32>
    %263 = tpu.matmul %241, %3, %cst_50 {dimension_numbers = #tpu.dot_dimension_numbers<[1], [0], [0], [1], [0, 0, 1, 1], [], []>} : vector<2x32xf32>, vector<32x128xf32>, vector<2x128xf32> -> vector<2x128xf32>
    %264 = arith.addf %262, %263 : vector<2x128xf32>
    %265 = arith.negf %264 : vector<2x128xf32>
    %266 = math.exp %265 : vector<2x128xf32>
    %cst_51 = arith.constant 1.000000e+00 : f32
    %267 = vector.broadcast %cst_51 : f32 to vector<2x128xf32>
    %268 = arith.addf %267, %266 : vector<2x128xf32>
    %269 = arith.divf %267, %268 : vector<2x128xf32>
    %270 = math.tanh %264 : vector<2x128xf32>
    %271 = vector.extract_strided_slice %269 {offsets = [0, 0], sizes = [2, 32], strides = [1, 1]} : vector<2x128xf32> to vector<2x32xf32>
    %272 = vector.extract_strided_slice %269 {offsets = [0, 32], sizes = [2, 32], strides = [1, 1]} : vector<2x128xf32> to vector<2x32xf32>
    %273 = vector.extract_strided_slice %270 {offsets = [0, 64], sizes = [2, 32], strides = [1, 1]} : vector<2x128xf32> to vector<2x32xf32>
    %274 = vector.extract_strided_slice %269 {offsets = [0, 96], sizes = [2, 32], strides = [1, 1]} : vector<2x128xf32> to vector<2x32xf32>
    %275 = arith.mulf %272, %239 : vector<2x32xf32>
    %276 = arith.mulf %271, %273 : vector<2x32xf32>
    %277 = arith.addf %275, %276 : vector<2x32xf32>
    %278 = math.tanh %277 : vector<2x32xf32>
    %279 = arith.mulf %274, %278 : vector<2x32xf32>
    %280 = vector.extract_strided_slice %9 {offsets = [14, 0], sizes = [2, 128], strides = [1, 1]} : vector<16x128xf32> to vector<2x128xf32>
    %cst_52 = arith.constant dense<0.000000e+00> : vector<2x128xf32>
    %281 = tpu.matmul %259, %2, %cst_52 {dimension_numbers = #tpu.dot_dimension_numbers<[1], [0], [0], [1], [0, 0, 1, 1], [], []>} : vector<2x32xf32>, vector<32x128xf32>, vector<2x128xf32> -> vector<2x128xf32>
    %282 = arith.addf %280, %281 : vector<2x128xf32>
    %283 = arith.negf %282 : vector<2x128xf32>
    %284 = math.exp %283 : vector<2x128xf32>
    %cst_53 = arith.constant 1.000000e+00 : f32
    %285 = vector.broadcast %cst_53 : f32 to vector<2x128xf32>
    %286 = arith.addf %285, %284 : vector<2x128xf32>
    %287 = arith.divf %285, %286 : vector<2x128xf32>
    %288 = math.tanh %282 : vector<2x128xf32>
    %289 = vector.extract_strided_slice %287 {offsets = [0, 0], sizes = [2, 32], strides = [1, 1]} : vector<2x128xf32> to vector<2x32xf32>
    %290 = vector.extract_strided_slice %287 {offsets = [0, 32], sizes = [2, 32], strides = [1, 1]} : vector<2x128xf32> to vector<2x32xf32>
    %291 = vector.extract_strided_slice %288 {offsets = [0, 64], sizes = [2, 32], strides = [1, 1]} : vector<2x128xf32> to vector<2x32xf32>
    %292 = vector.extract_strided_slice %287 {offsets = [0, 96], sizes = [2, 32], strides = [1, 1]} : vector<2x128xf32> to vector<2x32xf32>
    %293 = arith.mulf %290, %257 : vector<2x32xf32>
    %294 = arith.mulf %289, %291 : vector<2x32xf32>
    %295 = arith.addf %293, %294 : vector<2x32xf32>
    %296 = math.tanh %295 : vector<2x32xf32>
    %297 = arith.mulf %292, %296 : vector<2x32xf32>
    %cst_54 = arith.constant dense<0.000000e+00> : vector<2x128xf32>
    %298 = tpu.matmul %297, %1, %cst_54 {dimension_numbers = #tpu.dot_dimension_numbers<[1], [0], [0], [1], [0, 0, 1, 1], [], []>} : vector<2x32xf32>, vector<32x128xf32>, vector<2x128xf32> -> vector<2x128xf32>
    %299 = vector.broadcast %5 : vector<1x128xf32> to vector<2x128xf32>
    %300 = arith.addf %298, %299 : vector<2x128xf32>
    %cst_55 = arith.constant dense<0.000000e+00> : vector<2x128xf32>
    %301 = tpu.matmul %279, %3, %cst_55 {dimension_numbers = #tpu.dot_dimension_numbers<[1], [0], [0], [1], [0, 0, 1, 1], [], []>} : vector<2x32xf32>, vector<32x128xf32>, vector<2x128xf32> -> vector<2x128xf32>
    %302 = arith.addf %300, %301 : vector<2x128xf32>
    %303 = arith.negf %302 : vector<2x128xf32>
    %304 = math.exp %303 : vector<2x128xf32>
    %cst_56 = arith.constant 1.000000e+00 : f32
    %305 = vector.broadcast %cst_56 : f32 to vector<2x128xf32>
    %306 = arith.addf %305, %304 : vector<2x128xf32>
    %307 = arith.divf %305, %306 : vector<2x128xf32>
    %308 = math.tanh %302 : vector<2x128xf32>
    %309 = vector.extract_strided_slice %307 {offsets = [0, 0], sizes = [2, 32], strides = [1, 1]} : vector<2x128xf32> to vector<2x32xf32>
    %310 = vector.extract_strided_slice %307 {offsets = [0, 32], sizes = [2, 32], strides = [1, 1]} : vector<2x128xf32> to vector<2x32xf32>
    %311 = vector.extract_strided_slice %308 {offsets = [0, 64], sizes = [2, 32], strides = [1, 1]} : vector<2x128xf32> to vector<2x32xf32>
    %312 = vector.extract_strided_slice %307 {offsets = [0, 96], sizes = [2, 32], strides = [1, 1]} : vector<2x128xf32> to vector<2x32xf32>
    %313 = arith.mulf %310, %277 : vector<2x32xf32>
    %314 = arith.mulf %309, %311 : vector<2x32xf32>
    %315 = arith.addf %313, %314 : vector<2x32xf32>
    %316 = math.tanh %315 : vector<2x32xf32>
    %317 = arith.mulf %312, %316 : vector<2x32xf32>
    %318 = tpu.concatenate %51, %89, %127, %165, %203, %241, %279, %317 in 0 : vector<2x32xf32>, vector<2x32xf32>, vector<2x32xf32>, vector<2x32xf32>, vector<2x32xf32>, vector<2x32xf32>, vector<2x32xf32>, vector<2x32xf32> -> vector<16x32xf32>
    %c0_57 = arith.constant 0 : index
    %c0_58 = arith.constant 0 : index
    %319 = vector.load %arg7[%c0_57, %c0_58] : memref<32x2xf32, #tpu.memory_space<vmem>>, vector<32x2xf32>
    %cst_59 = arith.constant dense<0.000000e+00> : vector<16x2xf32>
    %320 = tpu.matmul %318, %319, %cst_59 {dimension_numbers = #tpu.dot_dimension_numbers<[1], [0], [0], [1], [0, 0, 1, 1], [], []>} : vector<16x32xf32>, vector<32x2xf32>, vector<16x2xf32> -> vector<16x2xf32>
    %c0_60 = arith.constant 0 : index
    %c0_61 = arith.constant 0 : index
    %321 = vector.load %arg8[%c0_60, %c0_61] : memref<1x2xf32, #tpu.memory_space<vmem>>, vector<1x2xf32>
    %322 = vector.broadcast %321 : vector<1x2xf32> to vector<16x2xf32>
    %323 = arith.addf %320, %322 : vector<16x2xf32>
    %c0_62 = arith.constant 0 : index
    %c0_63 = arith.constant 0 : index
    %324 = vector.load %arg9[%c0_62, %c0_63] : memref<16x2xf32, #tpu.memory_space<vmem>>, vector<16x2xf32>
    tpu.vector_store %arg9[%c0_62, %c0_63], %323 {strides = array<i32>} : memref<16x2xf32, #tpu.memory_space<vmem>>, vector<16x2xf32>,
    return
  }
}

</mosaic_0001>

<llo_original>
// kernel: rnn_lstm_forward.1
$region0: #{rnn_lstm_forward.1}
  #allocation0 [shape = 'u32[]', space=smem, size = 0x4, offset = 0x4, fixed_abs, tag = 'smem constant byte address 0x4 - core index']
  #allocation1 [shape = 'u32[144,128]{1,0:T(1,128)}', space=vmem, size = 0x12000, scoped, tag = 'internal scratch']
  %s0 = inlined_call_operand.vmem [shape: f32[16,512], index: 0, kind: input, shape index: {}]
  %s1 = inlined_call_operand.hbm [shape: f32[512,128], index: 1, kind: input, shape index: {}]
  %s2 = inlined_call_operand.vmem [shape: f32[32,128], index: 2, kind: input, shape index: {}]
  %s3 = inlined_call_operand.vmem [shape: f32[1,128], index: 3, kind: input, shape index: {}]
  %s4 = inlined_call_operand.vmem [shape: f32[32,128], index: 4, kind: input, shape index: {}]
  %s5 = inlined_call_operand.vmem [shape: f32[32,128], index: 5, kind: input, shape index: {}]
  %s6 = inlined_call_operand.vmem [shape: f32[1,128], index: 6, kind: input, shape index: {}]
  %s7 = inlined_call_operand.vmem [shape: f32[32,2], index: 7, kind: input, shape index: {}]
  %s8 = inlined_call_operand.vmem [shape: f32[1,2], index: 8, kind: input, shape index: {}]
  %s9 = inlined_call_operand.vmem [shape: f32[16,2], index: 9, kind: output, shape index: {}]
  %s10 = sld [smem:[#allocation0]]
  $region50: #{rnn_lstm_forward.1} parent=0
    _
  %s12 = ssub.s32 1, %s10
  %s13 = scalar_select 0, %s12, %s10
  $region1: #{rnn_lstm_forward.1} parent=0
    #allocation2 [shape = 'u8[262144]{0}', space=vmem, size = 0x40000, scoped, tag = 'input window, operand 1, single buffered']
    #allocation3 [shape = 's32[1]{0}', space=sflag, size = 0x4, scoped, tag = 'scoped memory for rnn_lstm_forward.1']
    %14 = vsyncpa [#allocation3], 0
    // Predicated region
    $region2: #{rnn_lstm_forward.1} parent=1 // pred_check
      _
    $region3: #{rnn_lstm_forward.1} parent=1 // pred_check_branch
      %16 = sbr.rel (0) target = $region5
    $region4: #{rnn_lstm_forward.1} parent=1 // pred_region
      _
    $region5: #{rnn_lstm_forward.1} parent=1 // pred_fallthru
      _
    // Predicated region
    $region6: #{rnn_lstm_forward.1} parent=1 // pred_check
      _
    $region7: #{rnn_lstm_forward.1} parent=1 // pred_check_branch
      %18 = sbr.rel (0) target = $region9
    $region8: #{rnn_lstm_forward.1} parent=1 // pred_region
      %s20 = ssub.s32 8192, 8192
      %21 = vsyncadd [#allocation3], %s20
      %s22 = sshll.u32 [#allocation2], 4
      %s23 = int_to_ptr.vmem [resolvable:$true] %s22
      %28 = dma.hbm_to_vmem [thread:$0]  %s1, 8192, %s23, [#allocation3], 128, 128, 8
    $region9: #{rnn_lstm_forward.1} parent=1 // pred_fallthru
      _
    // Predicated region
    $region10: #{rnn_lstm_forward.1} parent=1 // pred_check
      _
    $region11: #{rnn_lstm_forward.1} parent=1 // pred_check_branch
      %30 = sbr.rel (0) target = $region13
    $region12: #{rnn_lstm_forward.1} parent=1 // pred_region
      _
    $region13: #{rnn_lstm_forward.1} parent=1 // pred_fallthru
      _
    // Predicated region
    $region14: #{rnn_lstm_forward.1} parent=1 // pred_check
      _
    $region15: #{rnn_lstm_forward.1} parent=1 // pred_check_branch
      %32 = sbr.rel (0) target = $region17
    $region16: #{rnn_lstm_forward.1} parent=1 // pred_region
      _
    $region17: #{rnn_lstm_forward.1} parent=1 // pred_fallthru
      _
    // Predicated region
    $region18: #{rnn_lstm_forward.1} parent=1 // pred_check
      _
    $region19: #{rnn_lstm_forward.1} parent=1 // pred_check_branch
      %34 = sbr.rel (0) target = $region21
    $region20: #{rnn_lstm_forward.1} parent=1 // pred_region
      _
    $region21: #{rnn_lstm_forward.1} parent=1 // pred_fallthru
      _
    // Predicated region
    $region22: #{rnn_lstm_forward.1} parent=1 // pred_check
      _
    $region23: #{rnn_lstm_forward.1} parent=1 // pred_check_branch
      %36 = sbr.rel (0) target = $region25
    $region24: #{rnn_lstm_forward.1} parent=1 // pred_region
      _
    $region25: #{rnn_lstm_forward.1} parent=1 // pred_fallthru
      _
    // Predicated region
    $region26: #{rnn_lstm_forward.1} parent=1 // pred_check
      _
    $region27: #{rnn_lstm_forward.1} parent=1 // pred_check_branch
      %38 = sbr.rel (0) target = $region29
    $region28: #{rnn_lstm_forward.1} parent=1 // pred_region
      _
    $region29: #{rnn_lstm_forward.1} parent=1 // pred_fallthru
      _
    // Predicated region
    $region30: #{rnn_lstm_forward.1} parent=1 // pred_check
      _
    $region31: #{rnn_lstm_forward.1} parent=1 // pred_check_branch
      %40 = sbr.rel (0) target = $region33
    $region32: #{rnn_lstm_forward.1} parent=1 // pred_region
      _
    $region33: #{rnn_lstm_forward.1} parent=1 // pred_fallthru
      _
    // Predicated region
    $region34: #{rnn_lstm_forward.1} parent=1 // pred_check
      _
    $region35: #{rnn_lstm_forward.1} parent=1 // pred_check_branch
      %42 = sbr.rel (0) target = $region37
    $region36: #{rnn_lstm_forward.1} parent=1 // pred_region
      _
    $region37: #{rnn_lstm_forward.1} parent=1 // pred_fallthru
      _
    // Predicated region
    $region38: #{rnn_lstm_forward.1} parent=1 // pred_check
      _
    $region39: #{rnn_lstm_forward.1} parent=1 // pred_check_branch
      %44 = sbr.rel (0) target = $region41
    $region40: #{rnn_lstm_forward.1} parent=1 // pred_region
      %45 = dma.done [#allocation3], 8192
    $region41: #{rnn_lstm_forward.1} parent=1 // pred_fallthru
      _
    %v46 = vld [vmem:[#allocation2] sm:$0xff]
    %v47 = vld [vmem:[#allocation2 + $0x8] sm:$0xff]
    %v48 = vld [vmem:[#allocation2 + $0x10] sm:$0xff]
    %v49 = vld [vmem:[#allocation2 + $0x18] sm:$0xff]
    %v50 = vld [vmem:[#allocation2 + $0x20] sm:$0xff]
    %v51 = vld [vmem:[#allocation2 + $0x28] sm:$0xff]
    %v52 = vld [vmem:[#allocation2 + $0x30] sm:$0xff]
    %v53 = vld [vmem:[#allocation2 + $0x38] sm:$0xff]
    %v54 = vld [vmem:[#allocation2 + $0x40] sm:$0xff]
    %v55 = vld [vmem:[#allocation2 + $0x48] sm:$0xff]
    %v56 = vld [vmem:[#allocation2 + $0x50] sm:$0xff]
    %v57 = vld [vmem:[#allocation2 + $0x58] sm:$0xff]
    %v58 = vld [vmem:[#allocation2 + $0x60] sm:$0xff]
    %v59 = vld [vmem:[#allocation2 + $0x68] sm:$0xff]
    %v60 = vld [vmem:[#allocation2 + $0x70] sm:$0xff]
    %v61 = vld [vmem:[#allocation2 + $0x78] sm:$0xff]
    %v62 = vld [vmem:[#allocation2 + $0x80] sm:$0xff]
    %v63 = vld [vmem:[#allocation2 + $0x88] sm:$0xff]
    %v64 = vld [vmem:[#allocation2 + $0x90] sm:$0xff]
    %v65 = vld [vmem:[#allocation2 + $0x98] sm:$0xff]
    %v66 = vld [vmem:[#allocation2 + $0xa0] sm:$0xff]
    %v67 = vld [vmem:[#allocation2 + $0xa8] sm:$0xff]
    %v68 = vld [vmem:[#allocation2 + $0xb0] sm:$0xff]
    %v69 = vld [vmem:[#allocation2 + $0xb8] sm:$0xff]
    %v70 = vld [vmem:[#allocation2 + $0xc0] sm:$0xff]
    %v71 = vld [vmem:[#allocation2 + $0xc8] sm:$0xff]
    %v72 = vld [vmem:[#allocation2 + $0xd0] sm:$0xff]
    %v73 = vld [vmem:[#allocation2 + $0xd8] sm:$0xff]
    %v74 = vld [vmem:[#allocation2 + $0xe0] sm:$0xff]
    %v75 = vld [vmem:[#allocation2 + $0xe8] sm:$0xff]
    %v76 = vld [vmem:[#allocation2 + $0xf0] sm:$0xff]
    %v77 = vld [vmem:[#allocation2 + $0xf8] sm:$0xff]
    %v78 = vld [vmem:[#allocation2 + $0x100] sm:$0xff]
    %v79 = vld [vmem:[#allocation2 + $0x108] sm:$0xff]
    %v80 = vld [vmem:[#allocation2 + $0x110] sm:$0xff]
    %v81 = vld [vmem:[#allocation2 + $0x118] sm:$0xff]
    %v82 = vld [vmem:[#allocation2 + $0x120] sm:$0xff]
    %v83 = vld [vmem:[#allocation2 + $0x128] sm:$0xff]
    %v84 = vld [vmem:[#allocation2 + $0x130] sm:$0xff]
    %v85 = vld [vmem:[#allocation2 + $0x138] sm:$0xff]
    %v86 = vld [vmem:[#allocation2 + $0x140] sm:$0xff]
    %v87 = vld [vmem:[#allocation2 + $0x148] sm:$0xff]
    %v88 = vld [vmem:[#allocation2 + $0x150] sm:$0xff]
    %v89 = vld [vmem:[#allocation2 + $0x158] sm:$0xff]
    %v90 = vld [vmem:[#allocation2 + $0x160] sm:$0xff]
    %v91 = vld [vmem:[#allocation2 + $0x168] sm:$0xff]
    %v92 = vld [vmem:[#allocation2 + $0x170] sm:$0xff]
    %v93 = vld [vmem:[#allocation2 + $0x178] sm:$0xff]
    %v94 = vld [vmem:[#allocation2 + $0x180] sm:$0xff]
    %v95 = vld [vmem:[#allocation2 + $0x188] sm:$0xff]
    %v96 = vld [vmem:[#allocation2 + $0x190] sm:$0xff]
    %v97 = vld [vmem:[#allocation2 + $0x198] sm:$0xff]
    %v98 = vld [vmem:[#allocation2 + $0x1a0] sm:$0xff]
    %v99 = vld [vmem:[#allocation2 + $0x1a8] sm:$0xff]
    %v100 = vld [vmem:[#allocation2 + $0x1b0] sm:$0xff]
    %v101 = vld [vmem:[#allocation2 + $0x1b8] sm:$0xff]
    %v102 = vld [vmem:[#allocation2 + $0x1c0] sm:$0xff]
    %v103 = vld [vmem:[#allocation2 + $0x1c8] sm:$0xff]
    %v104 = vld [vmem:[#allocation2 + $0x1d0] sm:$0xff]
    %v105 = vld [vmem:[#allocation2 + $0x1d8] sm:$0xff]
    %v106 = vld [vmem:[#allocation2 + $0x1e0] sm:$0xff]
    %v107 = vld [vmem:[#allocation2 + $0x1e8] sm:$0xff]
    %v108 = vld [vmem:[#allocation2 + $0x1f0] sm:$0xff]
    %v109 = vld [vmem:[#allocation2 + $0x1f8] sm:$0xff]
    %v110 = vld [vmem:[%s4] sm:$0xff]
    %v111 = vld [vmem:[%s4 + $0x8] sm:$0xff]
    %v112 = vld [vmem:[%s4 + $0x10] sm:$0xff]
    %v113 = vld [vmem:[%s4 + $0x18] sm:$0xff]
    %v114 = vld [vmem:[%s2] sm:$0xff]
    %v115 = vld [vmem:[%s2 + $0x8] sm:$0xff]
    %v116 = vld [vmem:[%s2 + $0x10] sm:$0xff]
    %v117 = vld [vmem:[%s2 + $0x18] sm:$0xff]
    %v118 = vld [vmem:[%s5] sm:$0xff]
    %v119 = vld [vmem:[%s5 + $0x8] sm:$0xff]
    %v120 = vld [vmem:[%s5 + $0x10] sm:$0xff]
    %v121 = vld [vmem:[%s5 + $0x18] sm:$0xff]
    %v122 = vld [vmem:[%s3] sm:$0x1]
    %v123 = vld [vmem:[%s6] sm:$0x1]
    %v124 = vld [vmem:[%s0] sm:$0xff]
    %v125 = vld [vmem:[%s0 + $0x8] sm:$0xff]
    %v126 = vld [vmem:[%s0 + $0x10] sm:$0xff]
    %v127 = vld [vmem:[%s0 + $0x18] sm:$0xff]
    %v128 = vld [vmem:[%s0 + $0x20] sm:$0xff]
    %v129 = vld [vmem:[%s0 + $0x28] sm:$0xff]
    %v130 = vld [vmem:[%s0 + $0x30] sm:$0xff]
    %v131 = vld [vmem:[%s0 + $0x38] sm:$0xff]
    %v133 = vlaneseq
    %v134 = vshrl.u32 %v133, 7
    %v135 = vsub.s32 0, %v134
    %v136 = vrot.slane %v122, %v135
    %138 = vmatprep.subr.mxu0 0.0
    %139 = vmatpush1.msra.mxu0 %v46
    %140 = vmatprep.subr.mxu0 0.0
    %141 = vmatpush1.msra.mxu0 %v47
    %142 = vmatprep.subr.mxu0 0.0
    %143 = vmatpush1.msra.mxu0 %v48
    %144 = vmatprep.subr.mxu0 0.0
    %145 = vmatpush1.msra.mxu0 %v49
    %146 = vmatprep.subr.mxu0 0.0
    %147 = vmatpush1.msra.mxu0 %v50
    %148 = vmatprep.subr.mxu0 0.0
    %149 = vmatpush1.msra.mxu0 %v51
    %150 = vmatprep.subr.mxu0 0.0
    %151 = vmatpush1.msra.mxu0 %v52
    %152 = vmatprep.subr.mxu0 0.0
    %153 = vmatpush1.msra.mxu0 %v53
    %154 = vmatprep.subr.mxu0 0.0
    %155 = vmatpush1.msra.mxu0 %v54
    %156 = vmatprep.subr.mxu0 0.0
    %157 = vmatpush1.msra.mxu0 %v55
    %158 = vmatprep.subr.mxu0 0.0
    %159 = vmatpush1.msra.mxu0 %v56
    %160 = vmatprep.subr.mxu0 0.0
    %161 = vmatpush1.msra.mxu0 %v57
    %162 = vmatprep.subr.mxu0 0.0
    %163 = vmatpush1.msra.mxu0 %v58
    %164 = vmatprep.subr.mxu0 0.0
    %165 = vmatpush1.msra.mxu0 %v59
    %166 = vmatprep.subr.mxu0 0.0
    %167 = vmatpush1.msra.mxu0 %v60
    %168 = vmatprep.subr.mxu0 0.0
    %169 = vmatpush1.msra.mxu0 %v61
    %170 = vmatprep.subr.mxu0 0.0
    %171 = vmatpush1.msra.mxu0 %v62
    %172 = vmatprep.subr.mxu0 0.0
    %173 = vmatpush1.msra.mxu0 %v63
    %174 = vmatprep.subr.mxu0 0.0
    %175 = vmatpush1.msra.mxu0 %v64
    %176 = vmatprep.subr.mxu0 0.0
    %177 = vmatpush1.msra.mxu0 %v65
    %178 = vmatprep.subr.mxu0 0.0
    %179 = vmatpush1.msra.mxu0 %v66
    %180 = vmatprep.subr.mxu0 0.0
    %181 = vmatpush1.msra.mxu0 %v67
    %182 = vmatprep.subr.mxu0 0.0
    %183 = vmatpush1.msra.mxu0 %v68
    %184 = vmatprep.subr.mxu0 0.0
    %185 = vmatpush1.msra.mxu0 %v69
    %186 = vmatprep.subr.mxu0 0.0
    %187 = vmatpush1.msra.mxu0 %v70
    %188 = vmatprep.subr.mxu0 0.0
    %189 = vmatpush1.msra.mxu0 %v71
    %190 = vmatprep.subr.mxu0 0.0
    %191 = vmatpush1.msra.mxu0 %v72
    %192 = vmatprep.subr.mxu0 0.0
    %193 = vmatpush1.msra.mxu0 %v73
    %194 = vmatprep.subr.mxu0 0.0
    %195 = vmatpush1.msra.mxu0 %v74
    %196 = vmatprep.subr.mxu0 0.0
    %197 = vmatpush1.msra.mxu0 %v75
    %198 = vmatprep.subr.mxu0 0.0
    %199 = vmatpush1.msra.mxu0 %v76
    %200 = vmatprep.subr.mxu0 0.0
    %201 = vmatpush1.msra.mxu0 %v77
    %202 = vmatprep.mubr.f32.mxu0 %v125
    %203 = vmatmul.mubr.f32.gmra.mrb[0].mxu0 %v124
    %v204 = vpop.f32.mrb[0].mxu0
    %v205 = vadd.f32 %v136, %v204
    %v206 = vpop.f32.mrb[0].mxu0
    %207 = vmatprep.mubr.f32.mxu0 %v129
    %208 = vmatmul.mubr.f32.gmra.mrb[0].mxu0 %v128
    %v209 = vpop.f32.mrb[0].mxu0
    %v210 = vadd.f32 %v136, %v209
    %v211 = vpop.f32.mrb[0].mxu0
    %212 = vdwg.mxu0
    %213 = vmatprep.subr.mxu0 0.0
    %214 = vmatpush1.msra.mxu0 %v78
    %215 = vmatprep.subr.mxu0 0.0
    %216 = vmatpush1.msra.mxu0 %v79
    %217 = vmatprep.subr.mxu0 0.0
    %218 = vmatpush1.msra.mxu0 %v80
    %219 = vmatprep.subr.mxu0 0.0
    %220 = vmatpush1.msra.mxu0 %v81
    %221 = vmatprep.subr.mxu0 0.0
    %222 = vmatpush1.msra.mxu0 %v82
    %223 = vmatprep.subr.mxu0 0.0
    %224 = vmatpush1.msra.mxu0 %v83
    %225 = vmatprep.subr.mxu0 0.0
    %226 = vmatpush1.msra.mxu0 %v84
    %227 = vmatprep.subr.mxu0 0.0
    %228 = vmatpush1.msra.mxu0 %v85
    %229 = vmatprep.subr.mxu0 0.0
    %230 = vmatpush1.msra.mxu0 %v86
    %231 = vmatprep.subr.mxu0 0.0
    %232 = vmatpush1.msra.mxu0 %v87
    %233 = vmatprep.subr.mxu0 0.0
    %234 = vmatpush1.msra.mxu0 %v88
    %235 = vmatprep.subr.mxu0 0.0
    %236 = vmatpush1.msra.mxu0 %v89
    %237 = vmatprep.subr.mxu0 0.0
    %238 = vmatpush1.msra.mxu0 %v90
    %239 = vmatprep.subr.mxu0 0.0
    %240 = vmatpush1.msra.mxu0 %v91
    %241 = vmatprep.subr.mxu0 0.0
    %242 = vmatpush1.msra.mxu0 %v92
    %243 = vmatprep.subr.mxu0 0.0
    %244 = vmatpush1.msra.mxu0 %v93
    %245 = vmatprep.subr.mxu0 0.0
    %246 = vmatpush1.msra.mxu0 %v94
    %247 = vmatprep.subr.mxu0 0.0
    %248 = vmatpush1.msra.mxu0 %v95
    %249 = vmatprep.subr.mxu0 0.0
    %250 = vmatpush1.msra.mxu0 %v96
    %251 = vmatprep.subr.mxu0 0.0
    %252 = vmatpush1.msra.mxu0 %v97
    %253 = vmatprep.subr.mxu0 0.0
    %254 = vmatpush1.msra.mxu0 %v98
    %255 = vmatprep.subr.mxu0 0.0
    %256 = vmatpush1.msra.mxu0 %v99
    %257 = vmatprep.subr.mxu0 0.0
    %258 = vmatpush1.msra.mxu0 %v100
    %259 = vmatprep.subr.mxu0 0.0
    %260 = vmatpush1.msra.mxu0 %v101
    %261 = vmatprep.subr.mxu0 0.0
    %262 = vmatpush1.msra.mxu0 %v102
    %263 = vmatprep.subr.mxu0 0.0
    %264 = vmatpush1.msra.mxu0 %v103
    %265 = vmatprep.subr.mxu0 0.0
    %266 = vmatpush1.msra.mxu0 %v104
    %267 = vmatprep.subr.mxu0 0.0
    %268 = vmatpush1.msra.mxu0 %v105
    %269 = vmatprep.subr.mxu0 0.0
    %270 = vmatpush1.msra.mxu0 %v106
    %271 = vmatprep.subr.mxu0 0.0
    %272 = vmatpush1.msra.mxu0 %v107
    %273 = vmatprep.subr.mxu0 0.0
    %274 = vmatpush1.msra.mxu0 %v108
    %275 = vmatprep.subr.mxu0 0.0
    %276 = vmatpush1.msra.mxu0 %v109
    %277 = vmatprep.mubr.f32.mxu0 %v127
    %278 = vmatmul.mubr.f32.gmra.mrb[0].mxu0 %v126
    %v279 = vpop.f32.mrb[0].mxu0
    %v280 = vadd.f32 %v205, %v279
    %v281 = vpop.f32.mrb[0].mxu0
    %282 = vmatprep.mubr.f32.mxu0 %v131
    %283 = vmatmul.mubr.f32.gmra.mrb[0].mxu0 %v130
    %v284 = vpop.f32.mrb[0].mxu0
    %v285 = vadd.f32 %v210, %v284
    %v286 = vpop.f32.mrb[0].mxu0
    %287 = vdwg.mxu0
    %vm288 = vcmask 261120
    %v290 = vsel %vm288, 0.0, 0
    %292 = vmatprep.subr.mxu0 0.0
    %293 = vmatpush1.msra.mxu0 %v114
    %294 = vmatprep.subr.mxu0 0.0
    %295 = vmatpush1.msra.mxu0 %v115
    %296 = vmatprep.subr.mxu0 0.0
    %297 = vmatpush1.msra.mxu0 %v116
    %298 = vmatprep.subr.mxu0 0.0
    %299 = vmatpush1.msra.mxu0 %v117
    %300 = vmatprep.subr.mxu0 0.0
    %301 = vmatpush1.msra.mxu0 0.0
    %302 = vmatprep.subr.mxu0 0.0
    %303 = vmatpush1.msra.mxu0 0.0
    %304 = vmatprep.subr.mxu0 0.0
    %305 = vmatpush1.msra.mxu0 0.0
    %306 = vmatprep.subr.mxu0 0.0
    %307 = vmatpush1.msra.mxu0 0.0
    %308 = vmatprep.subr.mxu0 0.0
    %309 = vmatpush1.msra.mxu0 0.0
    %310 = vmatprep.subr.mxu0 0.0
    %311 = vmatpush1.msra.mxu0 0.0
    %312 = vmatprep.subr.mxu0 0.0
    %313 = vmatpush1.msra.mxu0 0.0
    %314 = vmatprep.subr.mxu0 0.0
    %315 = vmatpush1.msra.mxu0 0.0
    %316 = vmatprep.subr.mxu0 0.0
    %317 = vmatpush1.msra.mxu0 0.0
    %318 = vmatprep.subr.mxu0 0.0
    %319 = vmatpush1.msra.mxu0 0.0
    %320 = vmatprep.subr.mxu0 0.0
    %321 = vmatpush1.msra.mxu0 0.0
    %322 = vmatprep.subr.mxu0 0.0
    %323 = vmatpush1.msra.mxu0 0.0
    %324 = vmatprep.subr.mxu0 0.0
    %325 = vmatpush1.msra.mxu0 0.0
    %326 = vmatprep.subr.mxu0 0.0
    %327 = vmatpush1.msra.mxu0 0.0
    %328 = vmatprep.subr.mxu0 0.0
    %329 = vmatpush1.msra.mxu0 0.0
    %330 = vmatprep.subr.mxu0 0.0
    %331 = vmatpush1.msra.mxu0 0.0
    %332 = vmatprep.subr.mxu0 0.0
    %333 = vmatpush1.msra.mxu0 0.0
    %334 = vmatprep.subr.mxu0 0.0
    %335 = vmatpush1.msra.mxu0 0.0
    %336 = vmatprep.subr.mxu0 0.0
    %337 = vmatpush1.msra.mxu0 0.0
    %338 = vmatprep.subr.mxu0 0.0
    %339 = vmatpush1.msra.mxu0 0.0
    %340 = vmatprep.subr.mxu0 0.0
    %341 = vmatpush1.msra.mxu0 0.0
    %342 = vmatprep.subr.mxu0 0.0
    %343 = vmatpush1.msra.mxu0 0.0
    %344 = vmatprep.subr.mxu0 0.0
    %345 = vmatpush1.msra.mxu0 0.0
    %346 = vmatprep.subr.mxu0 0.0
    %347 = vmatpush1.msra.mxu0 0.0
    %348 = vmatprep.subr.mxu0 0.0
    %349 = vmatpush1.msra.mxu0 0.0
    %350 = vmatprep.subr.mxu0 0.0
    %351 = vmatpush1.msra.mxu0 0.0
    %352 = vmatprep.subr.mxu0 0.0
    %353 = vmatpush1.msra.mxu0 0.0
    %354 = vmatprep.subr.mxu0 0.0
    %355 = vmatpush1.msra.mxu0 0.0
    %356 = vmatprep.mubr.f32.mxu0 0.0
    %357 = vmatmul.mubr.f32.gmra.mrb[0].mxu0 %v290
    %v358 = vpop.f32.mrb[0].mxu0
    %v359 = vadd.f32 0.0, %v358
    %v360 = vpop.f32.mrb[0].mxu0
    %361 = vdwg.mxu0
    %v362 = vadd.f32 %v280, %v359
    %v363 = vxor.u32 %v362, 2147483648
    %v364 = vmul.f32 %v363, 1.442695
    %v365 = vpow.pop %v364
    %v366 = vadd.f32 %v365, 1.0
    %v367 = vrcp.pop %v366
    %v368 = vmul.f32 1.0, %v367
    %v369 = vtanh.pop %v362
    %v370 = vmul.f32 %v368, 0.0
    %372 = vrot.lane.b32.xlu0 %v369, 64
    %v373 = vpop.permute.xlu0 %372
    %v375 = vmul.f32 %v368, %v373
    %377 = vrot.lane.b32.xlu0 %v375, 32
    %v378 = vpop.permute.xlu0 %377
    %v380 = vadd.f32 %v370, %v378
    %v381 = vtanh.pop %v380
    %383 = vrot.lane.b32.xlu0 %v381, 64
    %v384 = vpop.permute.xlu0 %383
    %v386 = vmul.f32 %v368, %v384
    %v388 = vlaneseq
    %v389 = vshrl.u32 %v388, 7
    %v390 = vsub.s32 0, %v389
    %v391 = vrot.slane %v123, %v390
    %394 = vrot.lane.b32.xlu0 %v386, 32
    %v395 = vpop.permute.xlu0 %394
    %v396 = vsel %vm288, %v395, 0
    %398 = vmatprep.subr.mxu0 0.0
    %399 = vmatpush1.msra.mxu0 %v110
    %400 = vmatprep.subr.mxu0 0.0
    %401 = vmatpush1.msra.mxu0 %v111
    %402 = vmatprep.subr.mxu0 0.0
    %403 = vmatpush1.msra.mxu0 %v112
    %404 = vmatprep.subr.mxu0 0.0
    %405 = vmatpush1.msra.mxu0 %v113
    %406 = vmatprep.subr.mxu0 0.0
    %407 = vmatpush1.msra.mxu0 0.0
    %408 = vmatprep.subr.mxu0 0.0
    %409 = vmatpush1.msra.mxu0 0.0
    %410 = vmatprep.subr.mxu0 0.0
    %411 = vmatpush1.msra.mxu0 0.0
    %412 = vmatprep.subr.mxu0 0.0
    %413 = vmatpush1.msra.mxu0 0.0
    %414 = vmatprep.subr.mxu0 0.0
    %415 = vmatpush1.msra.mxu0 0.0
    %416 = vmatprep.subr.mxu0 0.0
    %417 = vmatpush1.msra.mxu0 0.0
    %418 = vmatprep.subr.mxu0 0.0
    %419 = vmatpush1.msra.mxu0 0.0
    %420 = vmatprep.subr.mxu0 0.0
    %421 = vmatpush1.msra.mxu0 0.0
    %422 = vmatprep.subr.mxu0 0.0
    %423 = vmatpush1.msra.mxu0 0.0
    %424 = vmatprep.subr.mxu0 0.0
    %425 = vmatpush1.msra.mxu0 0.0
    %426 = vmatprep.subr.mxu0 0.0
    %427 = vmatpush1.msra.mxu0 0.0
    %428 = vmatprep.subr.mxu0 0.0
    %429 = vmatpush1.msra.mxu0 0.0
    %430 = vmatprep.subr.mxu0 0.0
    %431 = vmatpush1.msra.mxu0 0.0
    %432 = vmatprep.subr.mxu0 0.0
    %433 = vmatpush1.msra.mxu0 0.0
    %434 = vmatprep.subr.mxu0 0.0
    %435 = vmatpush1.msra.mxu0 0.0
    %436 = vmatprep.subr.mxu0 0.0
    %437 = vmatpush1.msra.mxu0 0.0
    %438 = vmatprep.subr.mxu0 0.0
    %439 = vmatpush1.msra.mxu0 0.0
    %440 = vmatprep.subr.mxu0 0.0
    %441 = vmatpush1.msra.mxu0 0.0
    %442 = vmatprep.subr.mxu0 0.0
    %443 = vmatpush1.msra.mxu0 0.0
    %444 = vmatprep.subr.mxu0 0.0
    %445 = vmatpush1.msra.mxu0 0.0
    %446 = vmatprep.subr.mxu0 0.0
    %447 = vmatpush1.msra.mxu0 0.0
    %448 = vmatprep.subr.mxu0 0.0
    %449 = vmatpush1.msra.mxu0 0.0
    %450 = vmatprep.subr.mxu0 0.0
    %451 = vmatpush1.msra.mxu0 0.0
    %452 = vmatprep.subr.mxu0 0.0
    %453 = vmatpush1.msra.mxu0 0.0
    %454 = vmatprep.subr.mxu0 0.0
    %455 = vmatpush1.msra.mxu0 0.0
    %456 = vmatprep.subr.mxu0 0.0
    %457 = vmatpush1.msra.mxu0 0.0
    %458 = vmatprep.subr.mxu0 0.0
    %459 = vmatpush1.msra.mxu0 0.0
    %460 = vmatprep.subr.mxu0 0.0
    %461 = vmatpush1.msra.mxu0 0.0
    %462 = vmatprep.mubr.f32.mxu0 0.0
    %463 = vmatmul.mubr.f32.gmra.mrb[0].mxu0 %v396
    %v464 = vpop.f32.mrb[0].mxu0
    %v465 = vadd.f32 %v391, %v464
    %v466 = vpop.f32.mrb[0].mxu0
    %467 = vdwg.mxu0
    %468 = vmatprep.subr.mxu0 0.0
    %469 = vmatpush1.msra.mxu0 %v118
    %470 = vmatprep.subr.mxu0 0.0
    %471 = vmatpush1.msra.mxu0 %v119
    %472 = vmatprep.subr.mxu0 0.0
    %473 = vmatpush1.msra.mxu0 %v120
    %474 = vmatprep.subr.mxu0 0.0
    %475 = vmatpush1.msra.mxu0 %v121
    %476 = vmatprep.subr.mxu0 0.0
    %477 = vmatpush1.msra.mxu0 0.0
    %478 = vmatprep.subr.mxu0 0.0
    %479 = vmatpush1.msra.mxu0 0.0
    %480 = vmatprep.subr.mxu0 0.0
    %481 = vmatpush1.msra.mxu0 0.0
    %482 = vmatprep.subr.mxu0 0.0
    %483 = vmatpush1.msra.mxu0 0.0
    %484 = vmatprep.subr.mxu0 0.0
    %485 = vmatpush1.msra.mxu0 0.0
    %486 = vmatprep.subr.mxu0 0.0
    %487 = vmatpush1.msra.mxu0 0.0
    %488 = vmatprep.subr.mxu0 0.0
    %489 = vmatpush1.msra.mxu0 0.0
    %490 = vmatprep.subr.mxu0 0.0
    %491 = vmatpush1.msra.mxu0 0.0
    %492 = vmatprep.subr.mxu0 0.0
    %493 = vmatpush1.msra.mxu0 0.0
    %494 = vmatprep.subr.mxu0 0.0
    %495 = vmatpush1.msra.mxu0 0.0
    %496 = vmatprep.subr.mxu0 0.0
    %497 = vmatpush1.msra.mxu0 0.0
    %498 = vmatprep.subr.mxu0 0.0
    %499 = vmatpush1.msra.mxu0 0.0
    %500 = vmatprep.subr.mxu0 0.0
    %501 = vmatpush1.msra.mxu0 0.0
    %502 = vmatprep.subr.mxu0 0.0
    %503 = vmatpush1.msra.mxu0 0.0
    %504 = vmatprep.subr.mxu0 0.0
    %505 = vmatpush1.msra.mxu0 0.0
    %506 = vmatprep.subr.mxu0 0.0
    %507 = vmatpush1.msra.mxu0 0.0
    %508 = vmatprep.subr.mxu0 0.0
    %509 = vmatpush1.msra.mxu0 0.0
    %510 = vmatprep.subr.mxu0 0.0
    %511 = vmatpush1.msra.mxu0 0.0
    %512 = vmatprep.subr.mxu0 0.0
    %513 = vmatpush1.msra.mxu0 0.0
    %514 = vmatprep.subr.mxu0 0.0
    %515 = vmatpush1.msra.mxu0 0.0
    %516 = vmatprep.subr.mxu0 0.0
    %517 = vmatpush1.msra.mxu0 0.0
    %518 = vmatprep.subr.mxu0 0.0
    %519 = vmatpush1.msra.mxu0 0.0
    %520 = vmatprep.subr.mxu0 0.0
    %521 = vmatpush1.msra.mxu0 0.0
    %522 = vmatprep.subr.mxu0 0.0
    %523 = vmatpush1.msra.mxu0 0.0
    %524 = vmatprep.subr.mxu0 0.0
    %525 = vmatpush1.msra.mxu0 0.0
    %526 = vmatprep.subr.mxu0 0.0
    %527 = vmatpush1.msra.mxu0 0.0
    %528 = vmatprep.subr.mxu0 0.0
    %529 = vmatpush1.msra.mxu0 0.0
    %530 = vmatprep.subr.mxu0 0.0
    %531 = vmatpush1.msra.mxu0 0.0
    %532 = vmatprep.mubr.f32.mxu0 0.0
    %533 = vmatmul.mubr.f32.gmra.mrb[0].mxu0 %v290
    %v534 = vpop.f32.mrb[0].mxu0
    %v535 = vadd.f32 0.0, %v534
    %v536 = vpop.f32.mrb[0].mxu0
    %537 = vdwg.mxu0
    %v538 = vadd.f32 %v465, %v535
    %v539 = vxor.u32 %v538, 2147483648
    %v540 = vmul.f32 %v539, 1.442695
    %v541 = vpow.pop %v540
    %v542 = vadd.f32 %v541, 1.0
    %v543 = vrcp.pop %v542
    %v544 = vmul.f32 1.0, %v543
    %v545 = vtanh.pop %v538
    %v546 = vmul.f32 %v544, 0.0
    %548 = vrot.lane.b32.xlu0 %v545, 64
    %v549 = vpop.permute.xlu0 %548
    %v551 = vmul.f32 %v544, %v549
    %553 = vrot.lane.b32.xlu0 %v551, 32
    %v554 = vpop.permute.xlu0 %553
    %v556 = vadd.f32 %v546, %v554
    %v557 = vtanh.pop %v556
    %559 = vrot.lane.b32.xlu0 %v557, 64
    %v560 = vpop.permute.xlu0 %559
    %v562 = vmul.f32 %v544, %v560
    %563 = vmatprep.subr.mxu0 0.0
    %564 = vmatpush1.msra.mxu0 %v114
    %565 = vmatprep.subr.mxu0 0.0
    %566 = vmatpush1.msra.mxu0 %v115
    %567 = vmatprep.subr.mxu0 0.0
    %568 = vmatpush1.msra.mxu0 %v116
    %569 = vmatprep.subr.mxu0 0.0
    %570 = vmatpush1.msra.mxu0 %v117
    %571 = vmatprep.subr.mxu0 0.0
    %572 = vmatpush1.msra.mxu0 0.0
    %573 = vmatprep.subr.mxu0 0.0
    %574 = vmatpush1.msra.mxu0 0.0
    %575 = vmatprep.subr.mxu0 0.0
    %576 = vmatpush1.msra.mxu0 0.0
    %577 = vmatprep.subr.mxu0 0.0
    %578 = vmatpush1.msra.mxu0 0.0
    %579 = vmatprep.subr.mxu0 0.0
    %580 = vmatpush1.msra.mxu0 0.0
    %581 = vmatprep.subr.mxu0 0.0
    %582 = vmatpush1.msra.mxu0 0.0
    %583 = vmatprep.subr.mxu0 0.0
    %584 = vmatpush1.msra.mxu0 0.0
    %585 = vmatprep.subr.mxu0 0.0
    %586 = vmatpush1.msra.mxu0 0.0
    %587 = vmatprep.subr.mxu0 0.0
    %588 = vmatpush1.msra.mxu0 0.0
    %589 = vmatprep.subr.mxu0 0.0
    %590 = vmatpush1.msra.mxu0 0.0
    %591 = vmatprep.subr.mxu0 0.0
    %592 = vmatpush1.msra.mxu0 0.0
    %593 = vmatprep.subr.mxu0 0.0
    %594 = vmatpush1.msra.mxu0 0.0
    %595 = vmatprep.subr.mxu0 0.0
    %596 = vmatpush1.msra.mxu0 0.0
    %597 = vmatprep.subr.mxu0 0.0
    %598 = vmatpush1.msra.mxu0 0.0
    %599 = vmatprep.subr.mxu0 0.0
    %600 = vmatpush1.msra.mxu0 0.0
    %601 = vmatprep.subr.mxu0 0.0
    %602 = vmatpush1.msra.mxu0 0.0
    %603 = vmatprep.subr.mxu0 0.0
    %604 = vmatpush1.msra.mxu0 0.0
    %605 = vmatprep.subr.mxu0 0.0
    %606 = vmatpush1.msra.mxu0 0.0
    %607 = vmatprep.subr.mxu0 0.0
    %608 = vmatpush1.msra.mxu0 0.0
    %609 = vmatprep.subr.mxu0 0.0
    %610 = vmatpush1.msra.mxu0 0.0
    %611 = vmatprep.subr.mxu0 0.0
    %612 = vmatpush1.msra.mxu0 0.0
    %613 = vmatprep.subr.mxu0 0.0
    %614 = vmatpush1.msra.mxu0 0.0
    %615 = vmatprep.subr.mxu0 0.0
    %616 = vmatpush1.msra.mxu0 0.0
    %617 = vmatprep.subr.mxu0 0.0
    %618 = vmatpush1.msra.mxu0 0.0
    %619 = vmatprep.subr.mxu0 0.0
    %620 = vmatpush1.msra.mxu0 0.0
    %621 = vmatprep.subr.mxu0 0.0
    %622 = vmatpush1.msra.mxu0 0.0
    %623 = vmatprep.subr.mxu0 0.0
    %624 = vmatpush1.msra.mxu0 0.0
    %625 = vmatprep.subr.mxu0 0.0
    %626 = vmatpush1.msra.mxu0 0.0
    %627 = vmatprep.mubr.f32.mxu0 0.0
    %628 = vmatmul.mubr.f32.gmra.mrb[0].mxu0 %v396
    %v629 = vpop.f32.mrb[0].mxu0
    %v630 = vadd.f32 0.0, %v629
    %v631 = vpop.f32.mrb[0].mxu0
    %632 = vdwg.mxu0
    %v634 = vrot.slane %v630, 6
    %v636 = vadd.f32 %v280, %v634
    %v637 = vxor.u32 %v636, 2147483648
    %v638 = vmul.f32 %v637, 1.442695
    %v639 = vpow.pop %v638
    %v640 = vadd.f32 %v639, 1.0
    %v641 = vrcp.pop %v640
    %v642 = vmul.f32 1.0, %v641
    %v643 = vtanh.pop %v636
    %v645 = vrot.slane %v380, 6
    %v647 = vmul.f32 %v642, %v645
    %649 = vrot.lane.b32.xlu0 %v643, 64
    %v650 = vpop.permute.xlu0 %649
    %v652 = vmul.f32 %v642, %v650
    %654 = vrot.lane.b32.xlu0 %v652, 32
    %v655 = vpop.permute.xlu0 %654
    %v657 = vadd.f32 %v647, %v655
    %v658 = vtanh.pop %v657
    %660 = vrot.lane.b32.xlu0 %v658, 64
    %v661 = vpop.permute.xlu0 %660
    %v663 = vmul.f32 %v642, %v661
    %v665 = vrot.slane %v663, 2
    %666 = vrot.lane.b32.xlu0 %v665, 32
    %v667 = vpop.permute.xlu0 %666
    %v668 = vsel %vm288, %v667, 0
    %670 = vmatprep.subr.mxu0 0.0
    %671 = vmatpush1.msra.mxu0 %v110
    %672 = vmatprep.subr.mxu0 0.0
    %673 = vmatpush1.msra.mxu0 %v111
    %674 = vmatprep.subr.mxu0 0.0
    %675 = vmatpush1.msra.mxu0 %v112
    %676 = vmatprep.subr.mxu0 0.0
    %677 = vmatpush1.msra.mxu0 %v113
    %678 = vmatprep.subr.mxu0 0.0
    %679 = vmatpush1.msra.mxu0 0.0
    %680 = vmatprep.subr.mxu0 0.0
    %681 = vmatpush1.msra.mxu0 0.0
    %682 = vmatprep.subr.mxu0 0.0
    %683 = vmatpush1.msra.mxu0 0.0
    %684 = vmatprep.subr.mxu0 0.0
    %685 = vmatpush1.msra.mxu0 0.0
    %686 = vmatprep.subr.mxu0 0.0
    %687 = vmatpush1.msra.mxu0 0.0
    %688 = vmatprep.subr.mxu0 0.0
    %689 = vmatpush1.msra.mxu0 0.0
    %690 = vmatprep.subr.mxu0 0.0
    %691 = vmatpush1.msra.mxu0 0.0
    %692 = vmatprep.subr.mxu0 0.0
    %693 = vmatpush1.msra.mxu0 0.0
    %694 = vmatprep.subr.mxu0 0.0
    %695 = vmatpush1.msra.mxu0 0.0
    %696 = vmatprep.subr.mxu0 0.0
    %697 = vmatpush1.msra.mxu0 0.0
    %698 = vmatprep.subr.mxu0 0.0
    %699 = vmatpush1.msra.mxu0 0.0
    %700 = vmatprep.subr.mxu0 0.0
    %701 = vmatpush1.msra.mxu0 0.0
    %702 = vmatprep.subr.mxu0 0.0
    %703 = vmatpush1.msra.mxu0 0.0
    %704 = vmatprep.subr.mxu0 0.0
    %705 = vmatpush1.msra.mxu0 0.0
    %706 = vmatprep.subr.mxu0 0.0
    %707 = vmatpush1.msra.mxu0 0.0
    %708 = vmatprep.subr.mxu0 0.0
    %709 = vmatpush1.msra.mxu0 0.0
    %710 = vmatprep.subr.mxu0 0.0
    %711 = vmatpush1.msra.mxu0 0.0
    %712 = vmatprep.subr.mxu0 0.0
    %713 = vmatpush1.msra.mxu0 0.0
    %714 = vmatprep.subr.mxu0 0.0
    %715 = vmatpush1.msra.mxu0 0.0
    %716 = vmatprep.subr.mxu0 0.0
    %717 = vmatpush1.msra.mxu0 0.0
    %718 = vmatprep.subr.mxu0 0.0
    %719 = vmatpush1.msra.mxu0 0.0
    %720 = vmatprep.subr.mxu0 0.0
    %721 = vmatpush1.msra.mxu0 0.0
    %722 = vmatprep.subr.mxu0 0.0
    %723 = vmatpush1.msra.mxu0 0.0
    %724 = vmatprep.subr.mxu0 0.0
    %725 = vmatpush1.msra.mxu0 0.0
    %726 = vmatprep.subr.mxu0 0.0
    %727 = vmatpush1.msra.mxu0 0.0
    %728 = vmatprep.subr.mxu0 0.0
    %729 = vmatpush1.msra.mxu0 0.0
    %730 = vmatprep.subr.mxu0 0.0
    %731 = vmatpush1.msra.mxu0 0.0
    %732 = vmatprep.subr.mxu0 0.0
    %733 = vmatpush1.msra.mxu0 0.0
    %734 = vmatprep.mubr.f32.mxu0 0.0
    %735 = vmatmul.mubr.f32.gmra.mrb[0].mxu0 %v668
    %v736 = vpop.f32.mrb[0].mxu0
    %v737 = vadd.f32 %v391, %v736
    %v738 = vpop.f32.mrb[0].mxu0
    %739 = vdwg.mxu0
    %741 = vrot.lane.b32.xlu0 %v562, 32
    %v742 = vpop.permute.xlu0 %741
    %v743 = vsel %vm288, %v742, 0
    %745 = vmatprep.subr.mxu0 0.0
    %746 = vmatpush1.msra.mxu0 %v118
    %747 = vmatprep.subr.mxu0 0.0
    %748 = vmatpush1.msra.mxu0 %v119
    %749 = vmatprep.subr.mxu0 0.0
    %750 = vmatpush1.msra.mxu0 %v120
    %751 = vmatprep.subr.mxu0 0.0
    %752 = vmatpush1.msra.mxu0 %v121
    %753 = vmatprep.subr.mxu0 0.0
    %754 = vmatpush1.msra.mxu0 0.0
    %755 = vmatprep.subr.mxu0 0.0
    %756 = vmatpush1.msra.mxu0 0.0
    %757 = vmatprep.subr.mxu0 0.0
    %758 = vmatpush1.msra.mxu0 0.0
    %759 = vmatprep.subr.mxu0 0.0
    %760 = vmatpush1.msra.mxu0 0.0
    %761 = vmatprep.subr.mxu0 0.0
    %762 = vmatpush1.msra.mxu0 0.0
    %763 = vmatprep.subr.mxu0 0.0
    %764 = vmatpush1.msra.mxu0 0.0
    %765 = vmatprep.subr.mxu0 0.0
    %766 = vmatpush1.msra.mxu0 0.0
    %767 = vmatprep.subr.mxu0 0.0
    %768 = vmatpush1.msra.mxu0 0.0
    %769 = vmatprep.subr.mxu0 0.0
    %770 = vmatpush1.msra.mxu0 0.0
    %771 = vmatprep.subr.mxu0 0.0
    %772 = vmatpush1.msra.mxu0 0.0
    %773 = vmatprep.subr.mxu0 0.0
    %774 = vmatpush1.msra.mxu0 0.0
    %775 = vmatprep.subr.mxu0 0.0
    %776 = vmatpush1.msra.mxu0 0.0
    %777 = vmatprep.subr.mxu0 0.0
    %778 = vmatpush1.msra.mxu0 0.0
    %779 = vmatprep.subr.mxu0 0.0
    %780 = vmatpush1.msra.mxu0 0.0
    %781 = vmatprep.subr.mxu0 0.0
    %782 = vmatpush1.msra.mxu0 0.0
    %783 = vmatprep.subr.mxu0 0.0
    %784 = vmatpush1.msra.mxu0 0.0
    %785 = vmatprep.subr.mxu0 0.0
    %786 = vmatpush1.msra.mxu0 0.0
    %787 = vmatprep.subr.mxu0 0.0
    %788 = vmatpush1.msra.mxu0 0.0
    %789 = vmatprep.subr.mxu0 0.0
    %790 = vmatpush1.msra.mxu0 0.0
    %791 = vmatprep.subr.mxu0 0.0
    %792 = vmatpush1.msra.mxu0 0.0
    %793 = vmatprep.subr.mxu0 0.0
    %794 = vmatpush1.msra.mxu0 0.0
    %795 = vmatprep.subr.mxu0 0.0
    %796 = vmatpush1.msra.mxu0 0.0
    %797 = vmatprep.subr.mxu0 0.0
    %798 = vmatpush1.msra.mxu0 0.0
    %799 = vmatprep.subr.mxu0 0.0
    %800 = vmatpush1.msra.mxu0 0.0
    %801 = vmatprep.subr.mxu0 0.0
    %802 = vmatpush1.msra.mxu0 0.0
    %803 = vmatprep.subr.mxu0 0.0
    %804 = vmatpush1.msra.mxu0 0.0
    %805 = vmatprep.subr.mxu0 0.0
    %806 = vmatpush1.msra.mxu0 0.0
    %807 = vmatprep.subr.mxu0 0.0
    %808 = vmatpush1.msra.mxu0 0.0
    %809 = vmatprep.mubr.f32.mxu0 0.0
    %810 = vmatmul.mubr.f32.gmra.mrb[0].mxu0 %v743
    %v811 = vpop.f32.mrb[0].mxu0
    %v812 = vadd.f32 0.0, %v811
    %v813 = vpop.f32.mrb[0].mxu0
    %814 = vdwg.mxu0
    %v815 = vadd.f32 %v737, %v812
    %v816 = vxor.u32 %v815, 2147483648
    %v817 = vmul.f32 %v816, 1.442695
    %v818 = vpow.pop %v817
    %v819 = vadd.f32 %v818, 1.0
    %v820 = vrcp.pop %v819
    %v821 = vmul.f32 1.0, %v820
    %v822 = vtanh.pop %v815
    %v823 = vmul.f32 %v821, %v556
    %825 = vrot.lane.b32.xlu0 %v822, 64
    %v826 = vpop.permute.xlu0 %825
    %v828 = vmul.f32 %v821, %v826
    %830 = vrot.lane.b32.xlu0 %v828, 32
    %v831 = vpop.permute.xlu0 %830
    %v833 = vadd.f32 %v823, %v831
    %v834 = vtanh.pop %v833
    %836 = vrot.lane.b32.xlu0 %v834, 64
    %v837 = vpop.permute.xlu0 %836
    %v839 = vmul.f32 %v821, %v837
    %840 = vmatprep.subr.mxu0 0.0
    %841 = vmatpush1.msra.mxu0 %v114
    %842 = vmatprep.subr.mxu0 0.0
    %843 = vmatpush1.msra.mxu0 %v115
    %844 = vmatprep.subr.mxu0 0.0
    %845 = vmatpush1.msra.mxu0 %v116
    %846 = vmatprep.subr.mxu0 0.0
    %847 = vmatpush1.msra.mxu0 %v117
    %848 = vmatprep.subr.mxu0 0.0
    %849 = vmatpush1.msra.mxu0 0.0
    %850 = vmatprep.subr.mxu0 0.0
    %851 = vmatpush1.msra.mxu0 0.0
    %852 = vmatprep.subr.mxu0 0.0
    %853 = vmatpush1.msra.mxu0 0.0
    %854 = vmatprep.subr.mxu0 0.0
    %855 = vmatpush1.msra.mxu0 0.0
    %856 = vmatprep.subr.mxu0 0.0
    %857 = vmatpush1.msra.mxu0 0.0
    %858 = vmatprep.subr.mxu0 0.0
    %859 = vmatpush1.msra.mxu0 0.0
    %860 = vmatprep.subr.mxu0 0.0
    %861 = vmatpush1.msra.mxu0 0.0
    %862 = vmatprep.subr.mxu0 0.0
    %863 = vmatpush1.msra.mxu0 0.0
    %864 = vmatprep.subr.mxu0 0.0
    %865 = vmatpush1.msra.mxu0 0.0
    %866 = vmatprep.subr.mxu0 0.0
    %867 = vmatpush1.msra.mxu0 0.0
    %868 = vmatprep.subr.mxu0 0.0
    %869 = vmatpush1.msra.mxu0 0.0
    %870 = vmatprep.subr.mxu0 0.0
    %871 = vmatpush1.msra.mxu0 0.0
    %872 = vmatprep.subr.mxu0 0.0
    %873 = vmatpush1.msra.mxu0 0.0
    %874 = vmatprep.subr.mxu0 0.0
    %875 = vmatpush1.msra.mxu0 0.0
    %876 = vmatprep.subr.mxu0 0.0
    %877 = vmatpush1.msra.mxu0 0.0
    %878 = vmatprep.subr.mxu0 0.0
    %879 = vmatpush1.msra.mxu0 0.0
    %880 = vmatprep.subr.mxu0 0.0
    %881 = vmatpush1.msra.mxu0 0.0
    %882 = vmatprep.subr.mxu0 0.0
    %883 = vmatpush1.msra.mxu0 0.0
    %884 = vmatprep.subr.mxu0 0.0
    %885 = vmatpush1.msra.mxu0 0.0
    %886 = vmatprep.subr.mxu0 0.0
    %887 = vmatpush1.msra.mxu0 0.0
    %888 = vmatprep.subr.mxu0 0.0
    %889 = vmatpush1.msra.mxu0 0.0
    %890 = vmatprep.subr.mxu0 0.0
    %891 = vmatpush1.msra.mxu0 0.0
    %892 = vmatprep.subr.mxu0 0.0
    %893 = vmatpush1.msra.mxu0 0.0
    %894 = vmatprep.subr.mxu0 0.0
    %895 = vmatpush1.msra.mxu0 0.0
    %896 = vmatprep.subr.mxu0 0.0
    %897 = vmatpush1.msra.mxu0 0.0
    %898 = vmatprep.subr.mxu0 0.0
    %899 = vmatpush1.msra.mxu0 0.0
    %900 = vmatprep.subr.mxu0 0.0
    %901 = vmatpush1.msra.mxu0 0.0
    %902 = vmatprep.subr.mxu0 0.0
    %903 = vmatpush1.msra.mxu0 0.0
    %904 = vmatprep.mubr.f32.mxu0 0.0
    %905 = vmatmul.mubr.f32.gmra.mrb[0].mxu0 %v668
    %v906 = vpop.f32.mrb[0].mxu0
    %v907 = vadd.f32 0.0, %v906
    %v908 = vpop.f32.mrb[0].mxu0
    %909 = vdwg.mxu0
    %v911 = vrot.slane %v907, 4
    %v913 = vadd.f32 %v280, %v911
    %v914 = vxor.u32 %v913, 2147483648
    %v915 = vmul.f32 %v914, 1.442695
    %v916 = vpow.pop %v915
    %v917 = vadd.f32 %v916, 1.0
    %v918 = vrcp.pop %v917
    %v919 = vmul.f32 1.0, %v918
    %v920 = vtanh.pop %v913
    %v922 = vrot.slane %v657, 6
    %v924 = vmul.f32 %v919, %v922
    %926 = vrot.lane.b32.xlu0 %v920, 64
    %v927 = vpop.permute.xlu0 %926
    %v929 = vmul.f32 %v919, %v927
    %931 = vrot.lane.b32.xlu0 %v929, 32
    %v932 = vpop.permute.xlu0 %931
    %v934 = vadd.f32 %v924, %v932
    %v935 = vtanh.pop %v934
    %937 = vrot.lane.b32.xlu0 %v935, 64
    %v938 = vpop.permute.xlu0 %937
    %v940 = vmul.f32 %v919, %v938
    %v942 = vrot.slane %v940, 4
    %943 = vrot.lane.b32.xlu0 %v942, 32
    %v944 = vpop.permute.xlu0 %943
    %v945 = vsel %vm288, %v944, 0
    %947 = vmatprep.subr.mxu0 0.0
    %948 = vmatpush1.msra.mxu0 %v110
    %949 = vmatprep.subr.mxu0 0.0
    %950 = vmatpush1.msra.mxu0 %v111
    %951 = vmatprep.subr.mxu0 0.0
    %952 = vmatpush1.msra.mxu0 %v112
    %953 = vmatprep.subr.mxu0 0.0
    %954 = vmatpush1.msra.mxu0 %v113
    %955 = vmatprep.subr.mxu0 0.0
    %956 = vmatpush1.msra.mxu0 0.0
    %957 = vmatprep.subr.mxu0 0.0
    %958 = vmatpush1.msra.mxu0 0.0
    %959 = vmatprep.subr.mxu0 0.0
    %960 = vmatpush1.msra.mxu0 0.0
    %961 = vmatprep.subr.mxu0 0.0
    %962 = vmatpush1.msra.mxu0 0.0
    %963 = vmatprep.subr.mxu0 0.0
    %964 = vmatpush1.msra.mxu0 0.0
    %965 = vmatprep.subr.mxu0 0.0
    %966 = vmatpush1.msra.mxu0 0.0
    %967 = vmatprep.subr.mxu0 0.0
    %968 = vmatpush1.msra.mxu0 0.0
    %969 = vmatprep.subr.mxu0 0.0
    %970 = vmatpush1.msra.mxu0 0.0
    %971 = vmatprep.subr.mxu0 0.0
    %972 = vmatpush1.msra.mxu0 0.0
    %973 = vmatprep.subr.mxu0 0.0
    %974 = vmatpush1.msra.mxu0 0.0
    %975 = vmatprep.subr.mxu0 0.0
    %976 = vmatpush1.msra.mxu0 0.0
    %977 = vmatprep.subr.mxu0 0.0
    %978 = vmatpush1.msra.mxu0 0.0
    %979 = vmatprep.subr.mxu0 0.0
    %980 = vmatpush1.msra.mxu0 0.0
    %981 = vmatprep.subr.mxu0 0.0
    %982 = vmatpush1.msra.mxu0 0.0
    %983 = vmatprep.subr.mxu0 0.0
    %984 = vmatpush1.msra.mxu0 0.0
    %985 = vmatprep.subr.mxu0 0.0
    %986 = vmatpush1.msra.mxu0 0.0
    %987 = vmatprep.subr.mxu0 0.0
    %988 = vmatpush1.msra.mxu0 0.0
    %989 = vmatprep.subr.mxu0 0.0
    %990 = vmatpush1.msra.mxu0 0.0
    %991 = vmatprep.subr.mxu0 0.0
    %992 = vmatpush1.msra.mxu0 0.0
    %993 = vmatprep.subr.mxu0 0.0
    %994 = vmatpush1.msra.mxu0 0.0
    %995 = vmatprep.subr.mxu0 0.0
    %996 = vmatpush1.msra.mxu0 0.0
    %997 = vmatprep.subr.mxu0 0.0
    %998 = vmatpush1.msra.mxu0 0.0
    %999 = vmatprep.subr.mxu0 0.0
    %1000 = vmatpush1.msra.mxu0 0.0
    %1001 = vmatprep.subr.mxu0 0.0
    %1002 = vmatpush1.msra.mxu0 0.0
    %1003 = vmatprep.subr.mxu0 0.0
    %1004 = vmatpush1.msra.mxu0 0.0
    %1005 = vmatprep.subr.mxu0 0.0
    %1006 = vmatpush1.msra.mxu0 0.0
    %1007 = vmatprep.subr.mxu0 0.0
    %1008 = vmatpush1.msra.mxu0 0.0
    %1009 = vmatprep.subr.mxu0 0.0
    %1010 = vmatpush1.msra.mxu0 0.0
    %1011 = vmatprep.mubr.f32.mxu0 0.0
    %1012 = vmatmul.mubr.f32.gmra.mrb[0].mxu0 %v945
    %v1013 = vpop.f32.mrb[0].mxu0
    %v1014 = vadd.f32 %v391, %v1013
    %v1015 = vpop.f32.mrb[0].mxu0
    %1016 = vdwg.mxu0
    %1018 = vrot.lane.b32.xlu0 %v839, 32
    %v1019 = vpop.permute.xlu0 %1018
    %v1020 = vsel %vm288, %v1019, 0
    %1022 = vmatprep.subr.mxu0 0.0
    %1023 = vmatpush1.msra.mxu0 %v118
    %1024 = vmatprep.subr.mxu0 0.0
    %1025 = vmatpush1.msra.mxu0 %v119
    %1026 = vmatprep.subr.mxu0 0.0
    %1027 = vmatpush1.msra.mxu0 %v120
    %1028 = vmatprep.subr.mxu0 0.0
    %1029 = vmatpush1.msra.mxu0 %v121
    %1030 = vmatprep.subr.mxu0 0.0
    %1031 = vmatpush1.msra.mxu0 0.0
    %1032 = vmatprep.subr.mxu0 0.0
    %1033 = vmatpush1.msra.mxu0 0.0
    %1034 = vmatprep.subr.mxu0 0.0
    %1035 = vmatpush1.msra.mxu0 0.0
    %1036 = vmatprep.subr.mxu0 0.0
    %1037 = vmatpush1.msra.mxu0 0.0
    %1038 = vmatprep.subr.mxu0 0.0
    %1039 = vmatpush1.msra.mxu0 0.0
    %1040 = vmatprep.subr.mxu0 0.0
    %1041 = vmatpush1.msra.mxu0 0.0
    %1042 = vmatprep.subr.mxu0 0.0
    %1043 = vmatpush1.msra.mxu0 0.0
    %1044 = vmatprep.subr.mxu0 0.0
    %1045 = vmatpush1.msra.mxu0 0.0
    %1046 = vmatprep.subr.mxu0 0.0
    %1047 = vmatpush1.msra.mxu0 0.0
    %1048 = vmatprep.subr.mxu0 0.0
    %1049 = vmatpush1.msra.mxu0 0.0
    %1050 = vmatprep.subr.mxu0 0.0
    %1051 = vmatpush1.msra.mxu0 0.0
    %1052 = vmatprep.subr.mxu0 0.0
    %1053 = vmatpush1.msra.mxu0 0.0
    %1054 = vmatprep.subr.mxu0 0.0
    %1055 = vmatpush1.msra.mxu0 0.0
    %1056 = vmatprep.subr.mxu0 0.0
    %1057 = vmatpush1.msra.mxu0 0.0
    %1058 = vmatprep.subr.mxu0 0.0
    %1059 = vmatpush1.msra.mxu0 0.0
    %1060 = vmatprep.subr.mxu0 0.0
    %1061 = vmatpush1.msra.mxu0 0.0
    %1062 = vmatprep.subr.mxu0 0.0
    %1063 = vmatpush1.msra.mxu0 0.0
    %1064 = vmatprep.subr.mxu0 0.0
    %1065 = vmatpush1.msra.mxu0 0.0
    %1066 = vmatprep.subr.mxu0 0.0
    %1067 = vmatpush1.msra.mxu0 0.0
    %1068 = vmatprep.subr.mxu0 0.0
    %1069 = vmatpush1.msra.mxu0 0.0
    %1070 = vmatprep.subr.mxu0 0.0
    %1071 = vmatpush1.msra.mxu0 0.0
    %1072 = vmatprep.subr.mxu0 0.0
    %1073 = vmatpush1.msra.mxu0 0.0
    %1074 = vmatprep.subr.mxu0 0.0
    %1075 = vmatpush1.msra.mxu0 0.0
    %1076 = vmatprep.subr.mxu0 0.0
    %1077 = vmatpush1.msra.mxu0 0.0
    %1078 = vmatprep.subr.mxu0 0.0
    %1079 = vmatpush1.msra.mxu0 0.0
    %1080 = vmatprep.subr.mxu0 0.0
    %1081 = vmatpush1.msra.mxu0 0.0
    %1082 = vmatprep.subr.mxu0 0.0
    %1083 = vmatpush1.msra.mxu0 0.0
    %1084 = vmatprep.subr.mxu0 0.0
    %1085 = vmatpush1.msra.mxu0 0.0
    %1086 = vmatprep.mubr.f32.mxu0 0.0
    %1087 = vmatmul.mubr.f32.gmra.mrb[0].mxu0 %v1020
    %v1088 = vpop.f32.mrb[0].mxu0
    %v1089 = vadd.f32 0.0, %v1088
    %v1090 = vpop.f32.mrb[0].mxu0
    %1091 = vdwg.mxu0
    %v1092 = vadd.f32 %v1014, %v1089
    %v1093 = vxor.u32 %v1092, 2147483648
    %v1094 = vmul.f32 %v1093, 1.442695
    %v1095 = vpow.pop %v1094
    %v1096 = vadd.f32 %v1095, 1.0
    %v1097 = vrcp.pop %v1096
    %v1098 = vmul.f32 1.0, %v1097
    %v1099 = vtanh.pop %v1092
    %v1100 = vmul.f32 %v1098, %v833
    %1102 = vrot.lane.b32.xlu0 %v1099, 64
    %v1103 = vpop.permute.xlu0 %1102
    %v1105 = vmul.f32 %v1098, %v1103
    %1107 = vrot.lane.b32.xlu0 %v1105, 32
    %v1108 = vpop.permute.xlu0 %1107
    %v1110 = vadd.f32 %v1100, %v1108
    %v1111 = vtanh.pop %v1110
    %1113 = vrot.lane.b32.xlu0 %v1111, 64
    %v1114 = vpop.permute.xlu0 %1113
    %v1116 = vmul.f32 %v1098, %v1114
    %1117 = vmatprep.subr.mxu0 0.0
    %1118 = vmatpush1.msra.mxu0 %v114
    %1119 = vmatprep.subr.mxu0 0.0
    %1120 = vmatpush1.msra.mxu0 %v115
    %1121 = vmatprep.subr.mxu0 0.0
    %1122 = vmatpush1.msra.mxu0 %v116
    %1123 = vmatprep.subr.mxu0 0.0
    %1124 = vmatpush1.msra.mxu0 %v117
    %1125 = vmatprep.subr.mxu0 0.0
    %1126 = vmatpush1.msra.mxu0 0.0
    %1127 = vmatprep.subr.mxu0 0.0
    %1128 = vmatpush1.msra.mxu0 0.0
    %1129 = vmatprep.subr.mxu0 0.0
    %1130 = vmatpush1.msra.mxu0 0.0
    %1131 = vmatprep.subr.mxu0 0.0
    %1132 = vmatpush1.msra.mxu0 0.0
    %1133 = vmatprep.subr.mxu0 0.0
    %1134 = vmatpush1.msra.mxu0 0.0
    %1135 = vmatprep.subr.mxu0 0.0
    %1136 = vmatpush1.msra.mxu0 0.0
    %1137 = vmatprep.subr.mxu0 0.0
    %1138 = vmatpush1.msra.mxu0 0.0
    %1139 = vmatprep.subr.mxu0 0.0
    %1140 = vmatpush1.msra.mxu0 0.0
    %1141 = vmatprep.subr.mxu0 0.0
    %1142 = vmatpush1.msra.mxu0 0.0
    %1143 = vmatprep.subr.mxu0 0.0
    %1144 = vmatpush1.msra.mxu0 0.0
    %1145 = vmatprep.subr.mxu0 0.0
    %1146 = vmatpush1.msra.mxu0 0.0
    %1147 = vmatprep.subr.mxu0 0.0
    %1148 = vmatpush1.msra.mxu0 0.0
    %1149 = vmatprep.subr.mxu0 0.0
    %1150 = vmatpush1.msra.mxu0 0.0
    %1151 = vmatprep.subr.mxu0 0.0
    %1152 = vmatpush1.msra.mxu0 0.0
    %1153 = vmatprep.subr.mxu0 0.0
    %1154 = vmatpush1.msra.mxu0 0.0
    %1155 = vmatprep.subr.mxu0 0.0
    %1156 = vmatpush1.msra.mxu0 0.0
    %1157 = vmatprep.subr.mxu0 0.0
    %1158 = vmatpush1.msra.mxu0 0.0
    %1159 = vmatprep.subr.mxu0 0.0
    %1160 = vmatpush1.msra.mxu0 0.0
    %1161 = vmatprep.subr.mxu0 0.0
    %1162 = vmatpush1.msra.mxu0 0.0
    %1163 = vmatprep.subr.mxu0 0.0
    %1164 = vmatpush1.msra.mxu0 0.0
    %1165 = vmatprep.subr.mxu0 0.0
    %1166 = vmatpush1.msra.mxu0 0.0
    %1167 = vmatprep.subr.mxu0 0.0
    %1168 = vmatpush1.msra.mxu0 0.0
    %1169 = vmatprep.subr.mxu0 0.0
    %1170 = vmatpush1.msra.mxu0 0.0
    %1171 = vmatprep.subr.mxu0 0.0
    %1172 = vmatpush1.msra.mxu0 0.0
    %1173 = vmatprep.subr.mxu0 0.0
    %1174 = vmatpush1.msra.mxu0 0.0
    %1175 = vmatprep.subr.mxu0 0.0
    %1176 = vmatpush1.msra.mxu0 0.0
    %1177 = vmatprep.subr.mxu0 0.0
    %1178 = vmatpush1.msra.mxu0 0.0
    %1179 = vmatprep.subr.mxu0 0.0
    %1180 = vmatpush1.msra.mxu0 0.0
    %1181 = vmatprep.mubr.f32.mxu0 0.0
    %1182 = vmatmul.mubr.f32.gmra.mrb[0].mxu0 %v945
    %v1183 = vpop.f32.mrb[0].mxu0
    %v1184 = vadd.f32 0.0, %v1183
    %v1185 = vpop.f32.mrb[0].mxu0
    %1186 = vdwg.mxu0
    %v1188 = vrot.slane %v1184, 2
    %v1190 = vadd.f32 %v280, %v1188
    %v1191 = vxor.u32 %v1190, 2147483648
    %v1192 = vmul.f32 %v1191, 1.442695
    %v1193 = vpow.pop %v1192
    %v1194 = vadd.f32 %v1193, 1.0
    %v1195 = vrcp.pop %v1194
    %v1196 = vmul.f32 1.0, %v1195
    %v1197 = vtanh.pop %v1190
    %v1199 = vrot.slane %v934, 6
    %v1201 = vmul.f32 %v1196, %v1199
    %1203 = vrot.lane.b32.xlu0 %v1197, 64
    %v1204 = vpop.permute.xlu0 %1203
    %v1206 = vmul.f32 %v1196, %v1204
    %1208 = vrot.lane.b32.xlu0 %v1206, 32
    %v1209 = vpop.permute.xlu0 %1208
    %v1211 = vadd.f32 %v1201, %v1209
    %v1212 = vtanh.pop %v1211
    %1214 = vrot.lane.b32.xlu0 %v1212, 64
    %v1215 = vpop.permute.xlu0 %1214
    %v1217 = vmul.f32 %v1196, %v1215
    %v1219 = vrot.slane %v1217, 6
    %1220 = vrot.lane.b32.xlu0 %v1219, 32
    %v1221 = vpop.permute.xlu0 %1220
    %v1222 = vsel %vm288, %v1221, 0
    %1224 = vmatprep.subr.mxu0 0.0
    %1225 = vmatpush1.msra.mxu0 %v110
    %1226 = vmatprep.subr.mxu0 0.0
    %1227 = vmatpush1.msra.mxu0 %v111
    %1228 = vmatprep.subr.mxu0 0.0
    %1229 = vmatpush1.msra.mxu0 %v112
    %1230 = vmatprep.subr.mxu0 0.0
    %1231 = vmatpush1.msra.mxu0 %v113
    %1232 = vmatprep.subr.mxu0 0.0
    %1233 = vmatpush1.msra.mxu0 0.0
    %1234 = vmatprep.subr.mxu0 0.0
    %1235 = vmatpush1.msra.mxu0 0.0
    %1236 = vmatprep.subr.mxu0 0.0
    %1237 = vmatpush1.msra.mxu0 0.0
    %1238 = vmatprep.subr.mxu0 0.0
    %1239 = vmatpush1.msra.mxu0 0.0
    %1240 = vmatprep.subr.mxu0 0.0
    %1241 = vmatpush1.msra.mxu0 0.0
    %1242 = vmatprep.subr.mxu0 0.0
    %1243 = vmatpush1.msra.mxu0 0.0
    %1244 = vmatprep.subr.mxu0 0.0
    %1245 = vmatpush1.msra.mxu0 0.0
    %1246 = vmatprep.subr.mxu0 0.0
    %1247 = vmatpush1.msra.mxu0 0.0
    %1248 = vmatprep.subr.mxu0 0.0
    %1249 = vmatpush1.msra.mxu0 0.0
    %1250 = vmatprep.subr.mxu0 0.0
    %1251 = vmatpush1.msra.mxu0 0.0
    %1252 = vmatprep.subr.mxu0 0.0
    %1253 = vmatpush1.msra.mxu0 0.0
    %1254 = vmatprep.subr.mxu0 0.0
    %1255 = vmatpush1.msra.mxu0 0.0
    %1256 = vmatprep.subr.mxu0 0.0
    %1257 = vmatpush1.msra.mxu0 0.0
    %1258 = vmatprep.subr.mxu0 0.0
    %1259 = vmatpush1.msra.mxu0 0.0
    %1260 = vmatprep.subr.mxu0 0.0
    %1261 = vmatpush1.msra.mxu0 0.0
    %1262 = vmatprep.subr.mxu0 0.0
    %1263 = vmatpush1.msra.mxu0 0.0
    %1264 = vmatprep.subr.mxu0 0.0
    %1265 = vmatpush1.msra.mxu0 0.0
    %1266 = vmatprep.subr.mxu0 0.0
    %1267 = vmatpush1.msra.mxu0 0.0
    %1268 = vmatprep.subr.mxu0 0.0
    %1269 = vmatpush1.msra.mxu0 0.0
    %1270 = vmatprep.subr.mxu0 0.0
    %1271 = vmatpush1.msra.mxu0 0.0
    %1272 = vmatprep.subr.mxu0 0.0
    %1273 = vmatpush1.msra.mxu0 0.0
    %1274 = vmatprep.subr.mxu0 0.0
    %1275 = vmatpush1.msra.mxu0 0.0
    %1276 = vmatprep.subr.mxu0 0.0
    %1277 = vmatpush1.msra.mxu0 0.0
    %1278 = vmatprep.subr.mxu0 0.0
    %1279 = vmatpush1.msra.mxu0 0.0
    %1280 = vmatprep.subr.mxu0 0.0
    %1281 = vmatpush1.msra.mxu0 0.0
    %1282 = vmatprep.subr.mxu0 0.0
    %1283 = vmatpush1.msra.mxu0 0.0
    %1284 = vmatprep.subr.mxu0 0.0
    %1285 = vmatpush1.msra.mxu0 0.0
    %1286 = vmatprep.subr.mxu0 0.0
    %1287 = vmatpush1.msra.mxu0 0.0
    %1288 = vmatprep.mubr.f32.mxu0 0.0
    %1289 = vmatmul.mubr.f32.gmra.mrb[0].mxu0 %v1222
    %v1290 = vpop.f32.mrb[0].mxu0
    %v1291 = vadd.f32 %v391, %v1290
    %v1292 = vpop.f32.mrb[0].mxu0
    %1293 = vdwg.mxu0
    %1295 = vrot.lane.b32.xlu0 %v1116, 32
    %v1296 = vpop.permute.xlu0 %1295
    %v1297 = vsel %vm288, %v1296, 0
    %1299 = vmatprep.subr.mxu0 0.0
    %1300 = vmatpush1.msra.mxu0 %v118
    %1301 = vmatprep.subr.mxu0 0.0
    %1302 = vmatpush1.msra.mxu0 %v119
    %1303 = vmatprep.subr.mxu0 0.0
    %1304 = vmatpush1.msra.mxu0 %v120
    %1305 = vmatprep.subr.mxu0 0.0
    %1306 = vmatpush1.msra.mxu0 %v121
    %1307 = vmatprep.subr.mxu0 0.0
    %1308 = vmatpush1.msra.mxu0 0.0
    %1309 = vmatprep.subr.mxu0 0.0
    %1310 = vmatpush1.msra.mxu0 0.0
    %1311 = vmatprep.subr.mxu0 0.0
    %1312 = vmatpush1.msra.mxu0 0.0
    %1313 = vmatprep.subr.mxu0 0.0
    %1314 = vmatpush1.msra.mxu0 0.0
    %1315 = vmatprep.subr.mxu0 0.0
    %1316 = vmatpush1.msra.mxu0 0.0
    %1317 = vmatprep.subr.mxu0 0.0
    %1318 = vmatpush1.msra.mxu0 0.0
    %1319 = vmatprep.subr.mxu0 0.0
    %1320 = vmatpush1.msra.mxu0 0.0
    %1321 = vmatprep.subr.mxu0 0.0
    %1322 = vmatpush1.msra.mxu0 0.0
    %1323 = vmatprep.subr.mxu0 0.0
    %1324 = vmatpush1.msra.mxu0 0.0
    %1325 = vmatprep.subr.mxu0 0.0
    %1326 = vmatpush1.msra.mxu0 0.0
    %1327 = vmatprep.subr.mxu0 0.0
    %1328 = vmatpush1.msra.mxu0 0.0
    %1329 = vmatprep.subr.mxu0 0.0
    %1330 = vmatpush1.msra.mxu0 0.0
    %1331 = vmatprep.subr.mxu0 0.0
    %1332 = vmatpush1.msra.mxu0 0.0
    %1333 = vmatprep.subr.mxu0 0.0
    %1334 = vmatpush1.msra.mxu0 0.0
    %1335 = vmatprep.subr.mxu0 0.0
    %1336 = vmatpush1.msra.mxu0 0.0
    %1337 = vmatprep.subr.mxu0 0.0
    %1338 = vmatpush1.msra.mxu0 0.0
    %1339 = vmatprep.subr.mxu0 0.0
    %1340 = vmatpush1.msra.mxu0 0.0
    %1341 = vmatprep.subr.mxu0 0.0
    %1342 = vmatpush1.msra.mxu0 0.0
    %1343 = vmatprep.subr.mxu0 0.0
    %1344 = vmatpush1.msra.mxu0 0.0
    %1345 = vmatprep.subr.mxu0 0.0
    %1346 = vmatpush1.msra.mxu0 0.0
    %1347 = vmatprep.subr.mxu0 0.0
    %1348 = vmatpush1.msra.mxu0 0.0
    %1349 = vmatprep.subr.mxu0 0.0
    %1350 = vmatpush1.msra.mxu0 0.0
    %1351 = vmatprep.subr.mxu0 0.0
    %1352 = vmatpush1.msra.mxu0 0.0
    %1353 = vmatprep.subr.mxu0 0.0
    %1354 = vmatpush1.msra.mxu0 0.0
    %1355 = vmatprep.subr.mxu0 0.0
    %1356 = vmatpush1.msra.mxu0 0.0
    %1357 = vmatprep.subr.mxu0 0.0
    %1358 = vmatpush1.msra.mxu0 0.0
    %1359 = vmatprep.subr.mxu0 0.0
    %1360 = vmatpush1.msra.mxu0 0.0
    %1361 = vmatprep.subr.mxu0 0.0
    %1362 = vmatpush1.msra.mxu0 0.0
    %1363 = vmatprep.mubr.f32.mxu0 0.0
    %1364 = vmatmul.mubr.f32.gmra.mrb[0].mxu0 %v1297
    %v1365 = vpop.f32.mrb[0].mxu0
    %v1366 = vadd.f32 0.0, %v1365
    %v1367 = vpop.f32.mrb[0].mxu0
    %1368 = vdwg.mxu0
    %v1369 = vadd.f32 %v1291, %v1366
    %v1370 = vxor.u32 %v1369, 2147483648
    %v1371 = vmul.f32 %v1370, 1.442695
    %v1372 = vpow.pop %v1371
    %v1373 = vadd.f32 %v1372, 1.0
    %v1374 = vrcp.pop %v1373
    %v1375 = vmul.f32 1.0, %v1374
    %v1376 = vtanh.pop %v1369
    %v1377 = vmul.f32 %v1375, %v1110
    %1379 = vrot.lane.b32.xlu0 %v1376, 64
    %v1380 = vpop.permute.xlu0 %1379
    %v1382 = vmul.f32 %v1375, %v1380
    %1384 = vrot.lane.b32.xlu0 %v1382, 32
    %v1385 = vpop.permute.xlu0 %1384
    %v1387 = vadd.f32 %v1377, %v1385
    %v1388 = vtanh.pop %v1387
    %1390 = vrot.lane.b32.xlu0 %v1388, 64
    %v1391 = vpop.permute.xlu0 %1390
    %v1393 = vmul.f32 %v1375, %v1391
    %1394 = vmatprep.subr.mxu0 0.0
    %1395 = vmatpush1.msra.mxu0 %v114
    %1396 = vmatprep.subr.mxu0 0.0
    %1397 = vmatpush1.msra.mxu0 %v115
    %1398 = vmatprep.subr.mxu0 0.0
    %1399 = vmatpush1.msra.mxu0 %v116
    %1400 = vmatprep.subr.mxu0 0.0
    %1401 = vmatpush1.msra.mxu0 %v117
    %1402 = vmatprep.subr.mxu0 0.0
    %1403 = vmatpush1.msra.mxu0 0.0
    %1404 = vmatprep.subr.mxu0 0.0
    %1405 = vmatpush1.msra.mxu0 0.0
    %1406 = vmatprep.subr.mxu0 0.0
    %1407 = vmatpush1.msra.mxu0 0.0
    %1408 = vmatprep.subr.mxu0 0.0
    %1409 = vmatpush1.msra.mxu0 0.0
    %1410 = vmatprep.subr.mxu0 0.0
    %1411 = vmatpush1.msra.mxu0 0.0
    %1412 = vmatprep.subr.mxu0 0.0
    %1413 = vmatpush1.msra.mxu0 0.0
    %1414 = vmatprep.subr.mxu0 0.0
    %1415 = vmatpush1.msra.mxu0 0.0
    %1416 = vmatprep.subr.mxu0 0.0
    %1417 = vmatpush1.msra.mxu0 0.0
    %1418 = vmatprep.subr.mxu0 0.0
    %1419 = vmatpush1.msra.mxu0 0.0
    %1420 = vmatprep.subr.mxu0 0.0
    %1421 = vmatpush1.msra.mxu0 0.0
    %1422 = vmatprep.subr.mxu0 0.0
    %1423 = vmatpush1.msra.mxu0 0.0
    %1424 = vmatprep.subr.mxu0 0.0
    %1425 = vmatpush1.msra.mxu0 0.0
    %1426 = vmatprep.subr.mxu0 0.0
    %1427 = vmatpush1.msra.mxu0 0.0
    %1428 = vmatprep.subr.mxu0 0.0
    %1429 = vmatpush1.msra.mxu0 0.0
    %1430 = vmatprep.subr.mxu0 0.0
    %1431 = vmatpush1.msra.mxu0 0.0
    %1432 = vmatprep.subr.mxu0 0.0
    %1433 = vmatpush1.msra.mxu0 0.0
    %1434 = vmatprep.subr.mxu0 0.0
    %1435 = vmatpush1.msra.mxu0 0.0
    %1436 = vmatprep.subr.mxu0 0.0
    %1437 = vmatpush1.msra.mxu0 0.0
    %1438 = vmatprep.subr.mxu0 0.0
    %1439 = vmatpush1.msra.mxu0 0.0
    %1440 = vmatprep.subr.mxu0 0.0
    %1441 = vmatpush1.msra.mxu0 0.0
    %1442 = vmatprep.subr.mxu0 0.0
    %1443 = vmatpush1.msra.mxu0 0.0
    %1444 = vmatprep.subr.mxu0 0.0
    %1445 = vmatpush1.msra.mxu0 0.0
    %1446 = vmatprep.subr.mxu0 0.0
    %1447 = vmatpush1.msra.mxu0 0.0
    %1448 = vmatprep.subr.mxu0 0.0
    %1449 = vmatpush1.msra.mxu0 0.0
    %1450 = vmatprep.subr.mxu0 0.0
    %1451 = vmatpush1.msra.mxu0 0.0
    %1452 = vmatprep.subr.mxu0 0.0
    %1453 = vmatpush1.msra.mxu0 0.0
    %1454 = vmatprep.subr.mxu0 0.0
    %1455 = vmatpush1.msra.mxu0 0.0
    %1456 = vmatprep.subr.mxu0 0.0
    %1457 = vmatpush1.msra.mxu0 0.0
    %1458 = vmatprep.mubr.f32.mxu0 0.0
    %1459 = vmatmul.mubr.f32.gmra.mrb[0].mxu0 %v1222
    %v1460 = vpop.f32.mrb[0].mxu0
    %v1461 = vadd.f32 0.0, %v1460
    %v1462 = vpop.f32.mrb[0].mxu0
    %1463 = vdwg.mxu0
    %v1464 = vadd.f32 %v285, %v1461
    %v1465 = vxor.u32 %v1464, 2147483648
    %v1466 = vmul.f32 %v1465, 1.442695
    %v1467 = vpow.pop %v1466
    %v1468 = vadd.f32 %v1467, 1.0
    %v1469 = vrcp.pop %v1468
    %v1470 = vmul.f32 1.0, %v1469
    %v1471 = vtanh.pop %v1464
    %v1473 = vrot.slane %v1211, 6
    %v1475 = vmul.f32 %v1470, %v1473
    %1477 = vrot.lane.b32.xlu0 %v1471, 64
    %v1478 = vpop.permute.xlu0 %1477
    %v1480 = vmul.f32 %v1470, %v1478
    %1482 = vrot.lane.b32.xlu0 %v1480, 32
    %v1483 = vpop.permute.xlu0 %1482
    %v1485 = vadd.f32 %v1475, %v1483
    %v1486 = vtanh.pop %v1485
    %1488 = vrot.lane.b32.xlu0 %v1486, 64
    %v1489 = vpop.permute.xlu0 %1488
    %v1491 = vmul.f32 %v1470, %v1489
    %1493 = vrot.lane.b32.xlu0 %v1491, 32
    %v1494 = vpop.permute.xlu0 %1493
    %v1495 = vsel %vm288, %v1494, 0
    %1497 = vmatprep.subr.mxu0 0.0
    %1498 = vmatpush1.msra.mxu0 %v110
    %1499 = vmatprep.subr.mxu0 0.0
    %1500 = vmatpush1.msra.mxu0 %v111
    %1501 = vmatprep.subr.mxu0 0.0
    %1502 = vmatpush1.msra.mxu0 %v112
    %1503 = vmatprep.subr.mxu0 0.0
    %1504 = vmatpush1.msra.mxu0 %v113
    %1505 = vmatprep.subr.mxu0 0.0
    %1506 = vmatpush1.msra.mxu0 0.0
    %1507 = vmatprep.subr.mxu0 0.0
    %1508 = vmatpush1.msra.mxu0 0.0
    %1509 = vmatprep.subr.mxu0 0.0
    %1510 = vmatpush1.msra.mxu0 0.0
    %1511 = vmatprep.subr.mxu0 0.0
    %1512 = vmatpush1.msra.mxu0 0.0
    %1513 = vmatprep.subr.mxu0 0.0
    %1514 = vmatpush1.msra.mxu0 0.0
    %1515 = vmatprep.subr.mxu0 0.0
    %1516 = vmatpush1.msra.mxu0 0.0
    %1517 = vmatprep.subr.mxu0 0.0
    %1518 = vmatpush1.msra.mxu0 0.0
    %1519 = vmatprep.subr.mxu0 0.0
    %1520 = vmatpush1.msra.mxu0 0.0
    %1521 = vmatprep.subr.mxu0 0.0
    %1522 = vmatpush1.msra.mxu0 0.0
    %1523 = vmatprep.subr.mxu0 0.0
    %1524 = vmatpush1.msra.mxu0 0.0
    %1525 = vmatprep.subr.mxu0 0.0
    %1526 = vmatpush1.msra.mxu0 0.0
    %1527 = vmatprep.subr.mxu0 0.0
    %1528 = vmatpush1.msra.mxu0 0.0
    %1529 = vmatprep.subr.mxu0 0.0
    %1530 = vmatpush1.msra.mxu0 0.0
    %1531 = vmatprep.subr.mxu0 0.0
    %1532 = vmatpush1.msra.mxu0 0.0
    %1533 = vmatprep.subr.mxu0 0.0
    %1534 = vmatpush1.msra.mxu0 0.0
    %1535 = vmatprep.subr.mxu0 0.0
    %1536 = vmatpush1.msra.mxu0 0.0
    %1537 = vmatprep.subr.mxu0 0.0
    %1538 = vmatpush1.msra.mxu0 0.0
    %1539 = vmatprep.subr.mxu0 0.0
    %1540 = vmatpush1.msra.mxu0 0.0
    %1541 = vmatprep.subr.mxu0 0.0
    %1542 = vmatpush1.msra.mxu0 0.0
    %1543 = vmatprep.subr.mxu0 0.0
    %1544 = vmatpush1.msra.mxu0 0.0
    %1545 = vmatprep.subr.mxu0 0.0
    %1546 = vmatpush1.msra.mxu0 0.0
    %1547 = vmatprep.subr.mxu0 0.0
    %1548 = vmatpush1.msra.mxu0 0.0
    %1549 = vmatprep.subr.mxu0 0.0
    %1550 = vmatpush1.msra.mxu0 0.0
    %1551 = vmatprep.subr.mxu0 0.0
    %1552 = vmatpush1.msra.mxu0 0.0
    %1553 = vmatprep.subr.mxu0 0.0
    %1554 = vmatpush1.msra.mxu0 0.0
    %1555 = vmatprep.subr.mxu0 0.0
    %1556 = vmatpush1.msra.mxu0 0.0
    %1557 = vmatprep.subr.mxu0 0.0
    %1558 = vmatpush1.msra.mxu0 0.0
    %1559 = vmatprep.subr.mxu0 0.0
    %1560 = vmatpush1.msra.mxu0 0.0
    %1561 = vmatprep.mubr.f32.mxu0 0.0
    %1562 = vmatmul.mubr.f32.gmra.mrb[0].mxu0 %v1495
    %v1563 = vpop.f32.mrb[0].mxu0
    %v1564 = vadd.f32 %v391, %v1563
    %v1565 = vpop.f32.mrb[0].mxu0
    %1566 = vdwg.mxu0
    %1568 = vrot.lane.b32.xlu0 %v1393, 32
    %v1569 = vpop.permute.xlu0 %1568
    %v1570 = vsel %vm288, %v1569, 0
    %1572 = vmatprep.subr.mxu0 0.0
    %1573 = vmatpush1.msra.mxu0 %v118
    %1574 = vmatprep.subr.mxu0 0.0
    %1575 = vmatpush1.msra.mxu0 %v119
    %1576 = vmatprep.subr.mxu0 0.0
    %1577 = vmatpush1.msra.mxu0 %v120
    %1578 = vmatprep.subr.mxu0 0.0
    %1579 = vmatpush1.msra.mxu0 %v121
    %1580 = vmatprep.subr.mxu0 0.0
    %1581 = vmatpush1.msra.mxu0 0.0
    %1582 = vmatprep.subr.mxu0 0.0
    %1583 = vmatpush1.msra.mxu0 0.0
    %1584 = vmatprep.subr.mxu0 0.0
    %1585 = vmatpush1.msra.mxu0 0.0
    %1586 = vmatprep.subr.mxu0 0.0
    %1587 = vmatpush1.msra.mxu0 0.0
    %1588 = vmatprep.subr.mxu0 0.0
    %1589 = vmatpush1.msra.mxu0 0.0
    %1590 = vmatprep.subr.mxu0 0.0
    %1591 = vmatpush1.msra.mxu0 0.0
    %1592 = vmatprep.subr.mxu0 0.0
    %1593 = vmatpush1.msra.mxu0 0.0
    %1594 = vmatprep.subr.mxu0 0.0
    %1595 = vmatpush1.msra.mxu0 0.0
    %1596 = vmatprep.subr.mxu0 0.0
    %1597 = vmatpush1.msra.mxu0 0.0
    %1598 = vmatprep.subr.mxu0 0.0
    %1599 = vmatpush1.msra.mxu0 0.0
    %1600 = vmatprep.subr.mxu0 0.0
    %1601 = vmatpush1.msra.mxu0 0.0
    %1602 = vmatprep.subr.mxu0 0.0
    %1603 = vmatpush1.msra.mxu0 0.0
    %1604 = vmatprep.subr.mxu0 0.0
    %1605 = vmatpush1.msra.mxu0 0.0
    %1606 = vmatprep.subr.mxu0 0.0
    %1607 = vmatpush1.msra.mxu0 0.0
    %1608 = vmatprep.subr.mxu0 0.0
    %1609 = vmatpush1.msra.mxu0 0.0
    %1610 = vmatprep.subr.mxu0 0.0
    %1611 = vmatpush1.msra.mxu0 0.0
    %1612 = vmatprep.subr.mxu0 0.0
    %1613 = vmatpush1.msra.mxu0 0.0
    %1614 = vmatprep.subr.mxu0 0.0
    %1615 = vmatpush1.msra.mxu0 0.0
    %1616 = vmatprep.subr.mxu0 0.0
    %1617 = vmatpush1.msra.mxu0 0.0
    %1618 = vmatprep.subr.mxu0 0.0
    %1619 = vmatpush1.msra.mxu0 0.0
    %1620 = vmatprep.subr.mxu0 0.0
    %1621 = vmatpush1.msra.mxu0 0.0
    %1622 = vmatprep.subr.mxu0 0.0
    %1623 = vmatpush1.msra.mxu0 0.0
    %1624 = vmatprep.subr.mxu0 0.0
    %1625 = vmatpush1.msra.mxu0 0.0
    %1626 = vmatprep.subr.mxu0 0.0
    %1627 = vmatpush1.msra.mxu0 0.0
    %1628 = vmatprep.subr.mxu0 0.0
    %1629 = vmatpush1.msra.mxu0 0.0
    %1630 = vmatprep.subr.mxu0 0.0
    %1631 = vmatpush1.msra.mxu0 0.0
    %1632 = vmatprep.subr.mxu0 0.0
    %1633 = vmatpush1.msra.mxu0 0.0
    %1634 = vmatprep.subr.mxu0 0.0
    %1635 = vmatpush1.msra.mxu0 0.0
    %1636 = vmatprep.mubr.f32.mxu0 0.0
    %1637 = vmatmul.mubr.f32.gmra.mrb[0].mxu0 %v1570
    %v1638 = vpop.f32.mrb[0].mxu0
    %v1639 = vadd.f32 0.0, %v1638
    %v1640 = vpop.f32.mrb[0].mxu0
    %1641 = vdwg.mxu0
    %v1642 = vadd.f32 %v1564, %v1639
    %v1643 = vxor.u32 %v1642, 2147483648
    %v1644 = vmul.f32 %v1643, 1.442695
    %v1645 = vpow.pop %v1644
    %v1646 = vadd.f32 %v1645, 1.0
    %v1647 = vrcp.pop %v1646
    %v1648 = vmul.f32 1.0, %v1647
    %v1649 = vtanh.pop %v1642
    %v1650 = vmul.f32 %v1648, %v1387
    %1652 = vrot.lane.b32.xlu0 %v1649, 64
    %v1653 = vpop.permute.xlu0 %1652
    %v1655 = vmul.f32 %v1648, %v1653
    %1657 = vrot.lane.b32.xlu0 %v1655, 32
    %v1658 = vpop.permute.xlu0 %1657
    %v1660 = vadd.f32 %v1650, %v1658
    %v1661 = vtanh.pop %v1660
    %1663 = vrot.lane.b32.xlu0 %v1661, 64
    %v1664 = vpop.permute.xlu0 %1663
    %v1666 = vmul.f32 %v1648, %v1664
    %1667 = vmatprep.subr.mxu0 0.0
    %1668 = vmatpush1.msra.mxu0 %v114
    %1669 = vmatprep.subr.mxu0 0.0
    %1670 = vmatpush1.msra.mxu0 %v115
    %1671 = vmatprep.subr.mxu0 0.0
    %1672 = vmatpush1.msra.mxu0 %v116
    %1673 = vmatprep.subr.mxu0 0.0
    %1674 = vmatpush1.msra.mxu0 %v117
    %1675 = vmatprep.subr.mxu0 0.0
    %1676 = vmatpush1.msra.mxu0 0.0
    %1677 = vmatprep.subr.mxu0 0.0
    %1678 = vmatpush1.msra.mxu0 0.0
    %1679 = vmatprep.subr.mxu0 0.0
    %1680 = vmatpush1.msra.mxu0 0.0
    %1681 = vmatprep.subr.mxu0 0.0
    %1682 = vmatpush1.msra.mxu0 0.0
    %1683 = vmatprep.subr.mxu0 0.0
    %1684 = vmatpush1.msra.mxu0 0.0
    %1685 = vmatprep.subr.mxu0 0.0
    %1686 = vmatpush1.msra.mxu0 0.0
    %1687 = vmatprep.subr.mxu0 0.0
    %1688 = vmatpush1.msra.mxu0 0.0
    %1689 = vmatprep.subr.mxu0 0.0
    %1690 = vmatpush1.msra.mxu0 0.0
    %1691 = vmatprep.subr.mxu0 0.0
    %1692 = vmatpush1.msra.mxu0 0.0
    %1693 = vmatprep.subr.mxu0 0.0
    %1694 = vmatpush1.msra.mxu0 0.0
    %1695 = vmatprep.subr.mxu0 0.0
    %1696 = vmatpush1.msra.mxu0 0.0
    %1697 = vmatprep.subr.mxu0 0.0
    %1698 = vmatpush1.msra.mxu0 0.0
    %1699 = vmatprep.subr.mxu0 0.0
    %1700 = vmatpush1.msra.mxu0 0.0
    %1701 = vmatprep.subr.mxu0 0.0
    %1702 = vmatpush1.msra.mxu0 0.0
    %1703 = vmatprep.subr.mxu0 0.0
    %1704 = vmatpush1.msra.mxu0 0.0
    %1705 = vmatprep.subr.mxu0 0.0
    %1706 = vmatpush1.msra.mxu0 0.0
    %1707 = vmatprep.subr.mxu0 0.0
    %1708 = vmatpush1.msra.mxu0 0.0
    %1709 = vmatprep.subr.mxu0 0.0
    %1710 = vmatpush1.msra.mxu0 0.0
    %1711 = vmatprep.subr.mxu0 0.0
    %1712 = vmatpush1.msra.mxu0 0.0
    %1713 = vmatprep.subr.mxu0 0.0
    %1714 = vmatpush1.msra.mxu0 0.0
    %1715 = vmatprep.subr.mxu0 0.0
    %1716 = vmatpush1.msra.mxu0 0.0
    %1717 = vmatprep.subr.mxu0 0.0
    %1718 = vmatpush1.msra.mxu0 0.0
    %1719 = vmatprep.subr.mxu0 0.0
    %1720 = vmatpush1.msra.mxu0 0.0
    %1721 = vmatprep.subr.mxu0 0.0
    %1722 = vmatpush1.msra.mxu0 0.0
    %1723 = vmatprep.subr.mxu0 0.0
    %1724 = vmatpush1.msra.mxu0 0.0
    %1725 = vmatprep.subr.mxu0 0.0
    %1726 = vmatpush1.msra.mxu0 0.0
    %1727 = vmatprep.subr.mxu0 0.0
    %1728 = vmatpush1.msra.mxu0 0.0
    %1729 = vmatprep.subr.mxu0 0.0
    %1730 = vmatpush1.msra.mxu0 0.0
    %1731 = vmatprep.mubr.f32.mxu0 0.0
    %1732 = vmatmul.mubr.f32.gmra.mrb[0].mxu0 %v1495
    %v1733 = vpop.f32.mrb[0].mxu0
    %v1734 = vadd.f32 0.0, %v1733
    %v1735 = vpop.f32.mrb[0].mxu0
    %1736 = vdwg.mxu0
    %v1738 = vrot.slane %v1734, 6
    %v1740 = vadd.f32 %v285, %v1738
    %v1741 = vxor.u32 %v1740, 2147483648
    %v1742 = vmul.f32 %v1741, 1.442695
    %v1743 = vpow.pop %v1742
    %v1744 = vadd.f32 %v1743, 1.0
    %v1745 = vrcp.pop %v1744
    %v1746 = vmul.f32 1.0, %v1745
    %v1747 = vtanh.pop %v1740
    %v1749 = vrot.slane %v1485, 6
    %v1751 = vmul.f32 %v1746, %v1749
    %1753 = vrot.lane.b32.xlu0 %v1747, 64
    %v1754 = vpop.permute.xlu0 %1753
    %v1756 = vmul.f32 %v1746, %v1754
    %1758 = vrot.lane.b32.xlu0 %v1756, 32
    %v1759 = vpop.permute.xlu0 %1758
    %v1761 = vadd.f32 %v1751, %v1759
    %v1762 = vtanh.pop %v1761
    %1764 = vrot.lane.b32.xlu0 %v1762, 64
    %v1765 = vpop.permute.xlu0 %1764
    %v1767 = vmul.f32 %v1746, %v1765
    %v1769 = vrot.slane %v1767, 2
    %1770 = vrot.lane.b32.xlu0 %v1769, 32
    %v1771 = vpop.permute.xlu0 %1770
    %v1772 = vsel %vm288, %v1771, 0
    %1774 = vmatprep.subr.mxu0 0.0
    %1775 = vmatpush1.msra.mxu0 %v110
    %1776 = vmatprep.subr.mxu0 0.0
    %1777 = vmatpush1.msra.mxu0 %v111
    %1778 = vmatprep.subr.mxu0 0.0
    %1779 = vmatpush1.msra.mxu0 %v112
    %1780 = vmatprep.subr.mxu0 0.0
    %1781 = vmatpush1.msra.mxu0 %v113
    %1782 = vmatprep.subr.mxu0 0.0
    %1783 = vmatpush1.msra.mxu0 0.0
    %1784 = vmatprep.subr.mxu0 0.0
    %1785 = vmatpush1.msra.mxu0 0.0
    %1786 = vmatprep.subr.mxu0 0.0
    %1787 = vmatpush1.msra.mxu0 0.0
    %1788 = vmatprep.subr.mxu0 0.0
    %1789 = vmatpush1.msra.mxu0 0.0
    %1790 = vmatprep.subr.mxu0 0.0
    %1791 = vmatpush1.msra.mxu0 0.0
    %1792 = vmatprep.subr.mxu0 0.0
    %1793 = vmatpush1.msra.mxu0 0.0
    %1794 = vmatprep.subr.mxu0 0.0
    %1795 = vmatpush1.msra.mxu0 0.0
    %1796 = vmatprep.subr.mxu0 0.0
    %1797 = vmatpush1.msra.mxu0 0.0
    %1798 = vmatprep.subr.mxu0 0.0
    %1799 = vmatpush1.msra.mxu0 0.0
    %1800 = vmatprep.subr.mxu0 0.0
    %1801 = vmatpush1.msra.mxu0 0.0
    %1802 = vmatprep.subr.mxu0 0.0
    %1803 = vmatpush1.msra.mxu0 0.0
    %1804 = vmatprep.subr.mxu0 0.0
    %1805 = vmatpush1.msra.mxu0 0.0
    %1806 = vmatprep.subr.mxu0 0.0
    %1807 = vmatpush1.msra.mxu0 0.0
    %1808 = vmatprep.subr.mxu0 0.0
    %1809 = vmatpush1.msra.mxu0 0.0
    %1810 = vmatprep.subr.mxu0 0.0
    %1811 = vmatpush1.msra.mxu0 0.0
    %1812 = vmatprep.subr.mxu0 0.0
    %1813 = vmatpush1.msra.mxu0 0.0
    %1814 = vmatprep.subr.mxu0 0.0
    %1815 = vmatpush1.msra.mxu0 0.0
    %1816 = vmatprep.subr.mxu0 0.0
    %1817 = vmatpush1.msra.mxu0 0.0
    %1818 = vmatprep.subr.mxu0 0.0
    %1819 = vmatpush1.msra.mxu0 0.0
    %1820 = vmatprep.subr.mxu0 0.0
    %1821 = vmatpush1.msra.mxu0 0.0
    %1822 = vmatprep.subr.mxu0 0.0
    %1823 = vmatpush1.msra.mxu0 0.0
    %1824 = vmatprep.subr.mxu0 0.0
    %1825 = vmatpush1.msra.mxu0 0.0
    %1826 = vmatprep.subr.mxu0 0.0
    %1827 = vmatpush1.msra.mxu0 0.0
    %1828 = vmatprep.subr.mxu0 0.0
    %1829 = vmatpush1.msra.mxu0 0.0
    %1830 = vmatprep.subr.mxu0 0.0
    %1831 = vmatpush1.msra.mxu0 0.0
    %1832 = vmatprep.subr.mxu0 0.0
    %1833 = vmatpush1.msra.mxu0 0.0
    %1834 = vmatprep.subr.mxu0 0.0
    %1835 = vmatpush1.msra.mxu0 0.0
    %1836 = vmatprep.subr.mxu0 0.0
    %1837 = vmatpush1.msra.mxu0 0.0
    %1838 = vmatprep.mubr.f32.mxu0 0.0
    %1839 = vmatmul.mubr.f32.gmra.mrb[0].mxu0 %v1772
    %v1840 = vpop.f32.mrb[0].mxu0
    %v1841 = vadd.f32 %v391, %v1840
    %v1842 = vpop.f32.mrb[0].mxu0
    %1843 = vdwg.mxu0
    %1845 = vrot.lane.b32.xlu0 %v1666, 32
    %v1846 = vpop.permute.xlu0 %1845
    %v1847 = vsel %vm288, %v1846, 0
    %1849 = vmatprep.subr.mxu0 0.0
    %1850 = vmatpush1.msra.mxu0 %v118
    %1851 = vmatprep.subr.mxu0 0.0
    %1852 = vmatpush1.msra.mxu0 %v119
    %1853 = vmatprep.subr.mxu0 0.0
    %1854 = vmatpush1.msra.mxu0 %v120
    %1855 = vmatprep.subr.mxu0 0.0
    %1856 = vmatpush1.msra.mxu0 %v121
    %1857 = vmatprep.subr.mxu0 0.0
    %1858 = vmatpush1.msra.mxu0 0.0
    %1859 = vmatprep.subr.mxu0 0.0
    %1860 = vmatpush1.msra.mxu0 0.0
    %1861 = vmatprep.subr.mxu0 0.0
    %1862 = vmatpush1.msra.mxu0 0.0
    %1863 = vmatprep.subr.mxu0 0.0
    %1864 = vmatpush1.msra.mxu0 0.0
    %1865 = vmatprep.subr.mxu0 0.0
    %1866 = vmatpush1.msra.mxu0 0.0
    %1867 = vmatprep.subr.mxu0 0.0
    %1868 = vmatpush1.msra.mxu0 0.0
    %1869 = vmatprep.subr.mxu0 0.0
    %1870 = vmatpush1.msra.mxu0 0.0
    %1871 = vmatprep.subr.mxu0 0.0
    %1872 = vmatpush1.msra.mxu0 0.0
    %1873 = vmatprep.subr.mxu0 0.0
    %1874 = vmatpush1.msra.mxu0 0.0
    %1875 = vmatprep.subr.mxu0 0.0
    %1876 = vmatpush1.msra.mxu0 0.0
    %1877 = vmatprep.subr.mxu0 0.0
    %1878 = vmatpush1.msra.mxu0 0.0
    %1879 = vmatprep.subr.mxu0 0.0
    %1880 = vmatpush1.msra.mxu0 0.0
    %1881 = vmatprep.subr.mxu0 0.0
    %1882 = vmatpush1.msra.mxu0 0.0
    %1883 = vmatprep.subr.mxu0 0.0
    %1884 = vmatpush1.msra.mxu0 0.0
    %1885 = vmatprep.subr.mxu0 0.0
    %1886 = vmatpush1.msra.mxu0 0.0
    %1887 = vmatprep.subr.mxu0 0.0
    %1888 = vmatpush1.msra.mxu0 0.0
    %1889 = vmatprep.subr.mxu0 0.0
    %1890 = vmatpush1.msra.mxu0 0.0
    %1891 = vmatprep.subr.mxu0 0.0
    %1892 = vmatpush1.msra.mxu0 0.0
    %1893 = vmatprep.subr.mxu0 0.0
    %1894 = vmatpush1.msra.mxu0 0.0
    %1895 = vmatprep.subr.mxu0 0.0
    %1896 = vmatpush1.msra.mxu0 0.0
    %1897 = vmatprep.subr.mxu0 0.0
    %1898 = vmatpush1.msra.mxu0 0.0
    %1899 = vmatprep.subr.mxu0 0.0
    %1900 = vmatpush1.msra.mxu0 0.0
    %1901 = vmatprep.subr.mxu0 0.0
    %1902 = vmatpush1.msra.mxu0 0.0
    %1903 = vmatprep.subr.mxu0 0.0
    %1904 = vmatpush1.msra.mxu0 0.0
    %1905 = vmatprep.subr.mxu0 0.0
    %1906 = vmatpush1.msra.mxu0 0.0
    %1907 = vmatprep.subr.mxu0 0.0
    %1908 = vmatpush1.msra.mxu0 0.0
    %1909 = vmatprep.subr.mxu0 0.0
    %1910 = vmatpush1.msra.mxu0 0.0
    %1911 = vmatprep.subr.mxu0 0.0
    %1912 = vmatpush1.msra.mxu0 0.0
    %1913 = vmatprep.mubr.f32.mxu0 0.0
    %1914 = vmatmul.mubr.f32.gmra.mrb[0].mxu0 %v1847
    %v1915 = vpop.f32.mrb[0].mxu0
    %v1916 = vadd.f32 0.0, %v1915
    %v1917 = vpop.f32.mrb[0].mxu0
    %1918 = vdwg.mxu0
    %v1919 = vadd.f32 %v1841, %v1916
    %v1920 = vxor.u32 %v1919, 2147483648
    %v1921 = vmul.f32 %v1920, 1.442695
    %v1922 = vpow.pop %v1921
    %v1923 = vadd.f32 %v1922, 1.0
    %v1924 = vrcp.pop %v1923
    %v1925 = vmul.f32 1.0, %v1924
    %v1926 = vtanh.pop %v1919
    %v1927 = vmul.f32 %v1925, %v1660
    %1929 = vrot.lane.b32.xlu0 %v1926, 64
    %v1930 = vpop.permute.xlu0 %1929
    %v1932 = vmul.f32 %v1925, %v1930
    %1934 = vrot.lane.b32.xlu0 %v1932, 32
    %v1935 = vpop.permute.xlu0 %1934
    %v1937 = vadd.f32 %v1927, %v1935
    %v1938 = vtanh.pop %v1937
    %1940 = vrot.lane.b32.xlu0 %v1938, 64
    %v1941 = vpop.permute.xlu0 %1940
    %v1943 = vmul.f32 %v1925, %v1941
    %1944 = vmatprep.subr.mxu0 0.0
    %1945 = vmatpush1.msra.mxu0 %v114
    %1946 = vmatprep.subr.mxu0 0.0
    %1947 = vmatpush1.msra.mxu0 %v115
    %1948 = vmatprep.subr.mxu0 0.0
    %1949 = vmatpush1.msra.mxu0 %v116
    %1950 = vmatprep.subr.mxu0 0.0
    %1951 = vmatpush1.msra.mxu0 %v117
    %1952 = vmatprep.subr.mxu0 0.0
    %1953 = vmatpush1.msra.mxu0 0.0
    %1954 = vmatprep.subr.mxu0 0.0
    %1955 = vmatpush1.msra.mxu0 0.0
    %1956 = vmatprep.subr.mxu0 0.0
    %1957 = vmatpush1.msra.mxu0 0.0
    %1958 = vmatprep.subr.mxu0 0.0
    %1959 = vmatpush1.msra.mxu0 0.0
    %1960 = vmatprep.subr.mxu0 0.0
    %1961 = vmatpush1.msra.mxu0 0.0
    %1962 = vmatprep.subr.mxu0 0.0
    %1963 = vmatpush1.msra.mxu0 0.0
    %1964 = vmatprep.subr.mxu0 0.0
    %1965 = vmatpush1.msra.mxu0 0.0
    %1966 = vmatprep.subr.mxu0 0.0
    %1967 = vmatpush1.msra.mxu0 0.0
    %1968 = vmatprep.subr.mxu0 0.0
    %1969 = vmatpush1.msra.mxu0 0.0
    %1970 = vmatprep.subr.mxu0 0.0
    %1971 = vmatpush1.msra.mxu0 0.0
    %1972 = vmatprep.subr.mxu0 0.0
    %1973 = vmatpush1.msra.mxu0 0.0
    %1974 = vmatprep.subr.mxu0 0.0
    %1975 = vmatpush1.msra.mxu0 0.0
    %1976 = vmatprep.subr.mxu0 0.0
    %1977 = vmatpush1.msra.mxu0 0.0
    %1978 = vmatprep.subr.mxu0 0.0
    %1979 = vmatpush1.msra.mxu0 0.0
    %1980 = vmatprep.subr.mxu0 0.0
    %1981 = vmatpush1.msra.mxu0 0.0
    %1982 = vmatprep.subr.mxu0 0.0
    %1983 = vmatpush1.msra.mxu0 0.0
    %1984 = vmatprep.subr.mxu0 0.0
    %1985 = vmatpush1.msra.mxu0 0.0
    %1986 = vmatprep.subr.mxu0 0.0
    %1987 = vmatpush1.msra.mxu0 0.0
    %1988 = vmatprep.subr.mxu0 0.0
    %1989 = vmatpush1.msra.mxu0 0.0
    %1990 = vmatprep.subr.mxu0 0.0
    %1991 = vmatpush1.msra.mxu0 0.0
    %1992 = vmatprep.subr.mxu0 0.0
    %1993 = vmatpush1.msra.mxu0 0.0
    %1994 = vmatprep.subr.mxu0 0.0
    %1995 = vmatpush1.msra.mxu0 0.0
    %1996 = vmatprep.subr.mxu0 0.0
    %1997 = vmatpush1.msra.mxu0 0.0
    %1998 = vmatprep.subr.mxu0 0.0
    %1999 = vmatpush1.msra.mxu0 0.0
    %2000 = vmatprep.subr.mxu0 0.0
    %2001 = vmatpush1.msra.mxu0 0.0
    %2002 = vmatprep.subr.mxu0 0.0
    %2003 = vmatpush1.msra.mxu0 0.0
    %2004 = vmatprep.subr.mxu0 0.0
    %2005 = vmatpush1.msra.mxu0 0.0
    %2006 = vmatprep.subr.mxu0 0.0
    %2007 = vmatpush1.msra.mxu0 0.0
    %2008 = vmatprep.mubr.f32.mxu0 0.0
    %2009 = vmatmul.mubr.f32.gmra.mrb[0].mxu0 %v1772
    %v2010 = vpop.f32.mrb[0].mxu0
    %v2011 = vadd.f32 0.0, %v2010
    %v2012 = vpop.f32.mrb[0].mxu0
    %2013 = vdwg.mxu0
    %v2015 = vrot.slane %v2011, 4
    %v2017 = vadd.f32 %v285, %v2015
    %v2018 = vxor.u32 %v2017, 2147483648
    %v2019 = vmul.f32 %v2018, 1.442695
    %v2020 = vpow.pop %v2019
    %v2021 = vadd.f32 %v2020, 1.0
    %v2022 = vrcp.pop %v2021
    %v2023 = vmul.f32 1.0, %v2022
    %v2024 = vtanh.pop %v2017
    %v2026 = vrot.slane %v1761, 6
    %v2028 = vmul.f32 %v2023, %v2026
    %2030 = vrot.lane.b32.xlu0 %v2024, 64
    %v2031 = vpop.permute.xlu0 %2030
    %v2033 = vmul.f32 %v2023, %v2031
    %2035 = vrot.lane.b32.xlu0 %v2033, 32
    %v2036 = vpop.permute.xlu0 %2035
    %v2038 = vadd.f32 %v2028, %v2036
    %v2039 = vtanh.pop %v2038
    %2041 = vrot.lane.b32.xlu0 %v2039, 64
    %v2042 = vpop.permute.xlu0 %2041
    %v2044 = vmul.f32 %v2023, %v2042
    %v2046 = vrot.slane %v2044, 4
    %2047 = vrot.lane.b32.xlu0 %v2046, 32
    %v2048 = vpop.permute.xlu0 %2047
    %v2049 = vsel %vm288, %v2048, 0
    %2051 = vmatprep.subr.mxu0 0.0
    %2052 = vmatpush1.msra.mxu0 %v110
    %2053 = vmatprep.subr.mxu0 0.0
    %2054 = vmatpush1.msra.mxu0 %v111
    %2055 = vmatprep.subr.mxu0 0.0
    %2056 = vmatpush1.msra.mxu0 %v112
    %2057 = vmatprep.subr.mxu0 0.0
    %2058 = vmatpush1.msra.mxu0 %v113
    %2059 = vmatprep.subr.mxu0 0.0
    %2060 = vmatpush1.msra.mxu0 0.0
    %2061 = vmatprep.subr.mxu0 0.0
    %2062 = vmatpush1.msra.mxu0 0.0
    %2063 = vmatprep.subr.mxu0 0.0
    %2064 = vmatpush1.msra.mxu0 0.0
    %2065 = vmatprep.subr.mxu0 0.0
    %2066 = vmatpush1.msra.mxu0 0.0
    %2067 = vmatprep.subr.mxu0 0.0
    %2068 = vmatpush1.msra.mxu0 0.0
    %2069 = vmatprep.subr.mxu0 0.0
    %2070 = vmatpush1.msra.mxu0 0.0
    %2071 = vmatprep.subr.mxu0 0.0
    %2072 = vmatpush1.msra.mxu0 0.0
    %2073 = vmatprep.subr.mxu0 0.0
    %2074 = vmatpush1.msra.mxu0 0.0
    %2075 = vmatprep.subr.mxu0 0.0
    %2076 = vmatpush1.msra.mxu0 0.0
    %2077 = vmatprep.subr.mxu0 0.0
    %2078 = vmatpush1.msra.mxu0 0.0
    %2079 = vmatprep.subr.mxu0 0.0
    %2080 = vmatpush1.msra.mxu0 0.0
    %2081 = vmatprep.subr.mxu0 0.0
    %2082 = vmatpush1.msra.mxu0 0.0
    %2083 = vmatprep.subr.mxu0 0.0
    %2084 = vmatpush1.msra.mxu0 0.0
    %2085 = vmatprep.subr.mxu0 0.0
    %2086 = vmatpush1.msra.mxu0 0.0
    %2087 = vmatprep.subr.mxu0 0.0
    %2088 = vmatpush1.msra.mxu0 0.0
    %2089 = vmatprep.subr.mxu0 0.0
    %2090 = vmatpush1.msra.mxu0 0.0
    %2091 = vmatprep.subr.mxu0 0.0
    %2092 = vmatpush1.msra.mxu0 0.0
    %2093 = vmatprep.subr.mxu0 0.0
    %2094 = vmatpush1.msra.mxu0 0.0
    %2095 = vmatprep.subr.mxu0 0.0
    %2096 = vmatpush1.msra.mxu0 0.0
    %2097 = vmatprep.subr.mxu0 0.0
    %2098 = vmatpush1.msra.mxu0 0.0
    %2099 = vmatprep.subr.mxu0 0.0
    %2100 = vmatpush1.msra.mxu0 0.0
    %2101 = vmatprep.subr.mxu0 0.0
    %2102 = vmatpush1.msra.mxu0 0.0
    %2103 = vmatprep.subr.mxu0 0.0
    %2104 = vmatpush1.msra.mxu0 0.0
    %2105 = vmatprep.subr.mxu0 0.0
    %2106 = vmatpush1.msra.mxu0 0.0
    %2107 = vmatprep.subr.mxu0 0.0
    %2108 = vmatpush1.msra.mxu0 0.0
    %2109 = vmatprep.subr.mxu0 0.0
    %2110 = vmatpush1.msra.mxu0 0.0
    %2111 = vmatprep.subr.mxu0 0.0
    %2112 = vmatpush1.msra.mxu0 0.0
    %2113 = vmatprep.subr.mxu0 0.0
    %2114 = vmatpush1.msra.mxu0 0.0
    %2115 = vmatprep.mubr.f32.mxu0 0.0
    %2116 = vmatmul.mubr.f32.gmra.mrb[0].mxu0 %v2049
    %v2117 = vpop.f32.mrb[0].mxu0
    %v2118 = vadd.f32 %v391, %v2117
    %v2119 = vpop.f32.mrb[0].mxu0
    %2120 = vdwg.mxu0
    %2122 = vrot.lane.b32.xlu0 %v1943, 32
    %v2123 = vpop.permute.xlu0 %2122
    %v2124 = vsel %vm288, %v2123, 0
    %2126 = vmatprep.subr.mxu0 0.0
    %2127 = vmatpush1.msra.mxu0 %v118
    %2128 = vmatprep.subr.mxu0 0.0
    %2129 = vmatpush1.msra.mxu0 %v119
    %2130 = vmatprep.subr.mxu0 0.0
    %2131 = vmatpush1.msra.mxu0 %v120
    %2132 = vmatprep.subr.mxu0 0.0
    %2133 = vmatpush1.msra.mxu0 %v121
    %2134 = vmatprep.subr.mxu0 0.0
    %2135 = vmatpush1.msra.mxu0 0.0
    %2136 = vmatprep.subr.mxu0 0.0
    %2137 = vmatpush1.msra.mxu0 0.0
    %2138 = vmatprep.subr.mxu0 0.0
    %2139 = vmatpush1.msra.mxu0 0.0
    %2140 = vmatprep.subr.mxu0 0.0
    %2141 = vmatpush1.msra.mxu0 0.0
    %2142 = vmatprep.subr.mxu0 0.0
    %2143 = vmatpush1.msra.mxu0 0.0
    %2144 = vmatprep.subr.mxu0 0.0
    %2145 = vmatpush1.msra.mxu0 0.0
    %2146 = vmatprep.subr.mxu0 0.0
    %2147 = vmatpush1.msra.mxu0 0.0
    %2148 = vmatprep.subr.mxu0 0.0
    %2149 = vmatpush1.msra.mxu0 0.0
    %2150 = vmatprep.subr.mxu0 0.0
    %2151 = vmatpush1.msra.mxu0 0.0
    %2152 = vmatprep.subr.mxu0 0.0
    %2153 = vmatpush1.msra.mxu0 0.0
    %2154 = vmatprep.subr.mxu0 0.0
    %2155 = vmatpush1.msra.mxu0 0.0
    %2156 = vmatprep.subr.mxu0 0.0
    %2157 = vmatpush1.msra.mxu0 0.0
    %2158 = vmatprep.subr.mxu0 0.0
    %2159 = vmatpush1.msra.mxu0 0.0
    %2160 = vmatprep.subr.mxu0 0.0
    %2161 = vmatpush1.msra.mxu0 0.0
    %2162 = vmatprep.subr.mxu0 0.0
    %2163 = vmatpush1.msra.mxu0 0.0
    %2164 = vmatprep.subr.mxu0 0.0
    %2165 = vmatpush1.msra.mxu0 0.0
    %2166 = vmatprep.subr.mxu0 0.0
    %2167 = vmatpush1.msra.mxu0 0.0
    %2168 = vmatprep.subr.mxu0 0.0
    %2169 = vmatpush1.msra.mxu0 0.0
    %2170 = vmatprep.subr.mxu0 0.0
    %2171 = vmatpush1.msra.mxu0 0.0
    %2172 = vmatprep.subr.mxu0 0.0
    %2173 = vmatpush1.msra.mxu0 0.0
    %2174 = vmatprep.subr.mxu0 0.0
    %2175 = vmatpush1.msra.mxu0 0.0
    %2176 = vmatprep.subr.mxu0 0.0
    %2177 = vmatpush1.msra.mxu0 0.0
    %2178 = vmatprep.subr.mxu0 0.0
    %2179 = vmatpush1.msra.mxu0 0.0
    %2180 = vmatprep.subr.mxu0 0.0
    %2181 = vmatpush1.msra.mxu0 0.0
    %2182 = vmatprep.subr.mxu0 0.0
    %2183 = vmatpush1.msra.mxu0 0.0
    %2184 = vmatprep.subr.mxu0 0.0
    %2185 = vmatpush1.msra.mxu0 0.0
    %2186 = vmatprep.subr.mxu0 0.0
    %2187 = vmatpush1.msra.mxu0 0.0
    %2188 = vmatprep.subr.mxu0 0.0
    %2189 = vmatpush1.msra.mxu0 0.0
    %2190 = vmatprep.mubr.f32.mxu0 0.0
    %2191 = vmatmul.mubr.f32.gmra.mrb[0].mxu0 %v2124
    %v2192 = vpop.f32.mrb[0].mxu0
    %v2193 = vadd.f32 0.0, %v2192
    %v2194 = vpop.f32.mrb[0].mxu0
    %2195 = vdwg.mxu0
    %v2196 = vadd.f32 %v2118, %v2193
    %v2197 = vxor.u32 %v2196, 2147483648
    %v2198 = vmul.f32 %v2197, 1.442695
    %v2199 = vpow.pop %v2198
    %v2200 = vadd.f32 %v2199, 1.0
    %v2201 = vrcp.pop %v2200
    %v2202 = vmul.f32 1.0, %v2201
    %v2203 = vtanh.pop %v2196
    %v2204 = vmul.f32 %v2202, %v1937
    %2206 = vrot.lane.b32.xlu0 %v2203, 64
    %v2207 = vpop.permute.xlu0 %2206
    %v2209 = vmul.f32 %v2202, %v2207
    %2211 = vrot.lane.b32.xlu0 %v2209, 32
    %v2212 = vpop.permute.xlu0 %2211
    %v2214 = vadd.f32 %v2204, %v2212
    %v2215 = vtanh.pop %v2214
    %2217 = vrot.lane.b32.xlu0 %v2215, 64
    %v2218 = vpop.permute.xlu0 %2217
    %v2220 = vmul.f32 %v2202, %v2218
    %2221 = vmatprep.subr.mxu0 0.0
    %2222 = vmatpush1.msra.mxu0 %v114
    %2223 = vmatprep.subr.mxu0 0.0
    %2224 = vmatpush1.msra.mxu0 %v115
    %2225 = vmatprep.subr.mxu0 0.0
    %2226 = vmatpush1.msra.mxu0 %v116
    %2227 = vmatprep.subr.mxu0 0.0
    %2228 = vmatpush1.msra.mxu0 %v117
    %2229 = vmatprep.subr.mxu0 0.0
    %2230 = vmatpush1.msra.mxu0 0.0
    %2231 = vmatprep.subr.mxu0 0.0
    %2232 = vmatpush1.msra.mxu0 0.0
    %2233 = vmatprep.subr.mxu0 0.0
    %2234 = vmatpush1.msra.mxu0 0.0
    %2235 = vmatprep.subr.mxu0 0.0
    %2236 = vmatpush1.msra.mxu0 0.0
    %2237 = vmatprep.subr.mxu0 0.0
    %2238 = vmatpush1.msra.mxu0 0.0
    %2239 = vmatprep.subr.mxu0 0.0
    %2240 = vmatpush1.msra.mxu0 0.0
    %2241 = vmatprep.subr.mxu0 0.0
    %2242 = vmatpush1.msra.mxu0 0.0
    %2243 = vmatprep.subr.mxu0 0.0
    %2244 = vmatpush1.msra.mxu0 0.0
    %2245 = vmatprep.subr.mxu0 0.0
    %2246 = vmatpush1.msra.mxu0 0.0
    %2247 = vmatprep.subr.mxu0 0.0
    %2248 = vmatpush1.msra.mxu0 0.0
    %2249 = vmatprep.subr.mxu0 0.0
    %2250 = vmatpush1.msra.mxu0 0.0
    %2251 = vmatprep.subr.mxu0 0.0
    %2252 = vmatpush1.msra.mxu0 0.0
    %2253 = vmatprep.subr.mxu0 0.0
    %2254 = vmatpush1.msra.mxu0 0.0
    %2255 = vmatprep.subr.mxu0 0.0
    %2256 = vmatpush1.msra.mxu0 0.0
    %2257 = vmatprep.subr.mxu0 0.0
    %2258 = vmatpush1.msra.mxu0 0.0
    %2259 = vmatprep.subr.mxu0 0.0
    %2260 = vmatpush1.msra.mxu0 0.0
    %2261 = vmatprep.subr.mxu0 0.0
    %2262 = vmatpush1.msra.mxu0 0.0
    %2263 = vmatprep.subr.mxu0 0.0
    %2264 = vmatpush1.msra.mxu0 0.0
    %2265 = vmatprep.subr.mxu0 0.0
    %2266 = vmatpush1.msra.mxu0 0.0
    %2267 = vmatprep.subr.mxu0 0.0
    %2268 = vmatpush1.msra.mxu0 0.0
    %2269 = vmatprep.subr.mxu0 0.0
    %2270 = vmatpush1.msra.mxu0 0.0
    %2271 = vmatprep.subr.mxu0 0.0
    %2272 = vmatpush1.msra.mxu0 0.0
    %2273 = vmatprep.subr.mxu0 0.0
    %2274 = vmatpush1.msra.mxu0 0.0
    %2275 = vmatprep.subr.mxu0 0.0
    %2276 = vmatpush1.msra.mxu0 0.0
    %2277 = vmatprep.subr.mxu0 0.0
    %2278 = vmatpush1.msra.mxu0 0.0
    %2279 = vmatprep.subr.mxu0 0.0
    %2280 = vmatpush1.msra.mxu0 0.0
    %2281 = vmatprep.subr.mxu0 0.0
    %2282 = vmatpush1.msra.mxu0 0.0
    %2283 = vmatprep.subr.mxu0 0.0
    %2284 = vmatpush1.msra.mxu0 0.0
    %2285 = vmatprep.mubr.f32.mxu0 0.0
    %2286 = vmatmul.mubr.f32.gmra.mrb[0].mxu0 %v2049
    %v2287 = vpop.f32.mrb[0].mxu0
    %v2288 = vadd.f32 0.0, %v2287
    %v2289 = vpop.f32.mrb[0].mxu0
    %2290 = vdwg.mxu0
    %v2292 = vrot.slane %v2288, 2
    %v2294 = vadd.f32 %v285, %v2292
    %v2295 = vxor.u32 %v2294, 2147483648
    %v2296 = vmul.f32 %v2295, 1.442695
    %v2297 = vpow.pop %v2296
    %v2298 = vadd.f32 %v2297, 1.0
    %v2299 = vrcp.pop %v2298
    %v2300 = vmul.f32 1.0, %v2299
    %v2301 = vtanh.pop %v2294
    %v2303 = vrot.slane %v2038, 6
    %v2305 = vmul.f32 %v2300, %v2303
    %2307 = vrot.lane.b32.xlu0 %v2301, 64
    %v2308 = vpop.permute.xlu0 %2307
    %v2310 = vmul.f32 %v2300, %v2308
    %2312 = vrot.lane.b32.xlu0 %v2310, 32
    %v2313 = vpop.permute.xlu0 %2312
    %v2315 = vadd.f32 %v2305, %v2313
    %v2316 = vtanh.pop %v2315
    %2318 = vrot.lane.b32.xlu0 %v2316, 64
    %v2319 = vpop.permute.xlu0 %2318
    %v2321 = vmul.f32 %v2300, %v2319
    %v2323 = vrot.slane %v2321, 6
    %2324 = vrot.lane.b32.xlu0 %v2323, 32
    %v2325 = vpop.permute.xlu0 %2324
    %v2326 = vsel %vm288, %v2325, 0
    %2328 = vmatprep.subr.mxu0 0.0
    %2329 = vmatpush1.msra.mxu0 %v110
    %2330 = vmatprep.subr.mxu0 0.0
    %2331 = vmatpush1.msra.mxu0 %v111
    %2332 = vmatprep.subr.mxu0 0.0
    %2333 = vmatpush1.msra.mxu0 %v112
    %2334 = vmatprep.subr.mxu0 0.0
    %2335 = vmatpush1.msra.mxu0 %v113
    %2336 = vmatprep.subr.mxu0 0.0
    %2337 = vmatpush1.msra.mxu0 0.0
    %2338 = vmatprep.subr.mxu0 0.0
    %2339 = vmatpush1.msra.mxu0 0.0
    %2340 = vmatprep.subr.mxu0 0.0
    %2341 = vmatpush1.msra.mxu0 0.0
    %2342 = vmatprep.subr.mxu0 0.0
    %2343 = vmatpush1.msra.mxu0 0.0
    %2344 = vmatprep.subr.mxu0 0.0
    %2345 = vmatpush1.msra.mxu0 0.0
    %2346 = vmatprep.subr.mxu0 0.0
    %2347 = vmatpush1.msra.mxu0 0.0
    %2348 = vmatprep.subr.mxu0 0.0
    %2349 = vmatpush1.msra.mxu0 0.0
    %2350 = vmatprep.subr.mxu0 0.0
    %2351 = vmatpush1.msra.mxu0 0.0
    %2352 = vmatprep.subr.mxu0 0.0
    %2353 = vmatpush1.msra.mxu0 0.0
    %2354 = vmatprep.subr.mxu0 0.0
    %2355 = vmatpush1.msra.mxu0 0.0
    %2356 = vmatprep.subr.mxu0 0.0
    %2357 = vmatpush1.msra.mxu0 0.0
    %2358 = vmatprep.subr.mxu0 0.0
    %2359 = vmatpush1.msra.mxu0 0.0
    %2360 = vmatprep.subr.mxu0 0.0
    %2361 = vmatpush1.msra.mxu0 0.0
    %2362 = vmatprep.subr.mxu0 0.0
    %2363 = vmatpush1.msra.mxu0 0.0
    %2364 = vmatprep.subr.mxu0 0.0
    %2365 = vmatpush1.msra.mxu0 0.0
    %2366 = vmatprep.subr.mxu0 0.0
    %2367 = vmatpush1.msra.mxu0 0.0
    %2368 = vmatprep.subr.mxu0 0.0
    %2369 = vmatpush1.msra.mxu0 0.0
    %2370 = vmatprep.subr.mxu0 0.0
    %2371 = vmatpush1.msra.mxu0 0.0
    %2372 = vmatprep.subr.mxu0 0.0
    %2373 = vmatpush1.msra.mxu0 0.0
    %2374 = vmatprep.subr.mxu0 0.0
    %2375 = vmatpush1.msra.mxu0 0.0
    %2376 = vmatprep.subr.mxu0 0.0
    %2377 = vmatpush1.msra.mxu0 0.0
    %2378 = vmatprep.subr.mxu0 0.0
    %2379 = vmatpush1.msra.mxu0 0.0
    %2380 = vmatprep.subr.mxu0 0.0
    %2381 = vmatpush1.msra.mxu0 0.0
    %2382 = vmatprep.subr.mxu0 0.0
    %2383 = vmatpush1.msra.mxu0 0.0
    %2384 = vmatprep.subr.mxu0 0.0
    %2385 = vmatpush1.msra.mxu0 0.0
    %2386 = vmatprep.subr.mxu0 0.0
    %2387 = vmatpush1.msra.mxu0 0.0
    %2388 = vmatprep.subr.mxu0 0.0
    %2389 = vmatpush1.msra.mxu0 0.0
    %2390 = vmatprep.subr.mxu0 0.0
    %2391 = vmatpush1.msra.mxu0 0.0
    %2392 = vmatprep.mubr.f32.mxu0 0.0
    %2393 = vmatmul.mubr.f32.gmra.mrb[0].mxu0 %v2326
    %v2394 = vpop.f32.mrb[0].mxu0
    %v2395 = vadd.f32 %v391, %v2394
    %v2396 = vpop.f32.mrb[0].mxu0
    %2397 = vdwg.mxu0
    %2399 = vrot.lane.b32.xlu0 %v2220, 32
    %v2400 = vpop.permute.xlu0 %2399
    %v2401 = vsel %vm288, %v2400, 0
    %2403 = vmatprep.subr.mxu0 0.0
    %2404 = vmatpush1.msra.mxu0 %v118
    %2405 = vmatprep.subr.mxu0 0.0
    %2406 = vmatpush1.msra.mxu0 %v119
    %2407 = vmatprep.subr.mxu0 0.0
    %2408 = vmatpush1.msra.mxu0 %v120
    %2409 = vmatprep.subr.mxu0 0.0
    %2410 = vmatpush1.msra.mxu0 %v121
    %2411 = vmatprep.subr.mxu0 0.0
    %2412 = vmatpush1.msra.mxu0 0.0
    %2413 = vmatprep.subr.mxu0 0.0
    %2414 = vmatpush1.msra.mxu0 0.0
    %2415 = vmatprep.subr.mxu0 0.0
    %2416 = vmatpush1.msra.mxu0 0.0
    %2417 = vmatprep.subr.mxu0 0.0
    %2418 = vmatpush1.msra.mxu0 0.0
    %2419 = vmatprep.subr.mxu0 0.0
    %2420 = vmatpush1.msra.mxu0 0.0
    %2421 = vmatprep.subr.mxu0 0.0
    %2422 = vmatpush1.msra.mxu0 0.0
    %2423 = vmatprep.subr.mxu0 0.0
    %2424 = vmatpush1.msra.mxu0 0.0
    %2425 = vmatprep.subr.mxu0 0.0
    %2426 = vmatpush1.msra.mxu0 0.0
    %2427 = vmatprep.subr.mxu0 0.0
    %2428 = vmatpush1.msra.mxu0 0.0
    %2429 = vmatprep.subr.mxu0 0.0
    %2430 = vmatpush1.msra.mxu0 0.0
    %2431 = vmatprep.subr.mxu0 0.0
    %2432 = vmatpush1.msra.mxu0 0.0
    %2433 = vmatprep.subr.mxu0 0.0
    %2434 = vmatpush1.msra.mxu0 0.0
    %2435 = vmatprep.subr.mxu0 0.0
    %2436 = vmatpush1.msra.mxu0 0.0
    %2437 = vmatprep.subr.mxu0 0.0
    %2438 = vmatpush1.msra.mxu0 0.0
    %2439 = vmatprep.subr.mxu0 0.0
    %2440 = vmatpush1.msra.mxu0 0.0
    %2441 = vmatprep.subr.mxu0 0.0
    %2442 = vmatpush1.msra.mxu0 0.0
    %2443 = vmatprep.subr.mxu0 0.0
    %2444 = vmatpush1.msra.mxu0 0.0
    %2445 = vmatprep.subr.mxu0 0.0
    %2446 = vmatpush1.msra.mxu0 0.0
    %2447 = vmatprep.subr.mxu0 0.0
    %2448 = vmatpush1.msra.mxu0 0.0
    %2449 = vmatprep.subr.mxu0 0.0
    %2450 = vmatpush1.msra.mxu0 0.0
    %2451 = vmatprep.subr.mxu0 0.0
    %2452 = vmatpush1.msra.mxu0 0.0
    %2453 = vmatprep.subr.mxu0 0.0
    %2454 = vmatpush1.msra.mxu0 0.0
    %2455 = vmatprep.subr.mxu0 0.0
    %2456 = vmatpush1.msra.mxu0 0.0
    %2457 = vmatprep.subr.mxu0 0.0
    %2458 = vmatpush1.msra.mxu0 0.0
    %2459 = vmatprep.subr.mxu0 0.0
    %2460 = vmatpush1.msra.mxu0 0.0
    %2461 = vmatprep.subr.mxu0 0.0
    %2462 = vmatpush1.msra.mxu0 0.0
    %2463 = vmatprep.subr.mxu0 0.0
    %2464 = vmatpush1.msra.mxu0 0.0
    %2465 = vmatprep.subr.mxu0 0.0
    %2466 = vmatpush1.msra.mxu0 0.0
    %2467 = vmatprep.mubr.f32.mxu0 0.0
    %2468 = vmatmul.mubr.f32.gmra.mrb[0].mxu0 %v2401
    %v2469 = vpop.f32.mrb[0].mxu0
    %v2470 = vadd.f32 0.0, %v2469
    %v2471 = vpop.f32.mrb[0].mxu0
    %2472 = vdwg.mxu0
    %v2473 = vadd.f32 %v2395, %v2470
    %v2474 = vxor.u32 %v2473, 2147483648
    %v2475 = vmul.f32 %v2474, 1.442695
    %v2476 = vpow.pop %v2475
    %v2477 = vadd.f32 %v2476, 1.0
    %v2478 = vrcp.pop %v2477
    %v2479 = vmul.f32 1.0, %v2478
    %v2480 = vtanh.pop %v2473
    %v2481 = vmul.f32 %v2479, %v2214
    %2483 = vrot.lane.b32.xlu0 %v2480, 64
    %v2484 = vpop.permute.xlu0 %2483
    %v2486 = vmul.f32 %v2479, %v2484
    %2488 = vrot.lane.b32.xlu0 %v2486, 32
    %v2489 = vpop.permute.xlu0 %2488
    %v2491 = vadd.f32 %v2481, %v2489
    %v2492 = vtanh.pop %v2491
    %2494 = vrot.lane.b32.xlu0 %v2492, 64
    %v2495 = vpop.permute.xlu0 %2494
    %v2497 = vmul.f32 %v2479, %v2495
    %v2498 = vrot.slane %v839, 6
    %v2500 = vrot.slane %v1116, 4
    %v2502 = vrot.slane %v1393, 2
    %v2504 = vrot.slane %v1943, 6
    %v2506 = vrot.slane %v2220, 4
    %v2509 = vrot.slane %v2497, 2
    %vm2511 = vcmask 1041408
    %v2512 = vsel %vm2511, %v562, %v2498
    %vm2513 = vcmask 1043456
    %v2514 = vsel %vm2513, %v2512, %v2500
    %vm2515 = vcmask 1045504
    %v2516 = vsel %vm2515, %v2514, %v2502
    %v2517 = vsel %vm2511, %v1666, %v2504
    %v2518 = vsel %vm2513, %v2517, %v2506
    %v2519 = vsel %vm2515, %v2518, %v2509
    %v2520 = vld [vmem:[%s7] sm:$0xff]
    %v2521 = vld [vmem:[%s7 + $0x8] sm:$0xff]
    %v2522 = vld [vmem:[%s7 + $0x10] sm:$0xff]
    %v2523 = vld [vmem:[%s7 + $0x18] sm:$0xff]
    %v2524 = vld [vmem:[%s8] sm:$0x1]
    %v2526 = vlaneseq
    %v2527 = vshrl.u32 %v2526, 7
    %v2528 = vsub.s32 0, %v2527
    %v2529 = vrot.slane %v2524, %v2528
    %2533 = vrot.lane.b32.xlu0 %v2516, 32
    %v2534 = vpop.permute.xlu0 %2533
    %2535 = vrot.lane.b32.xlu0 %v2519, 32
    %v2536 = vpop.permute.xlu0 %2535
    %v2537 = vsel %vm288, %v2534, 0
    %v2539 = vsel %vm288, %v2536, 0
    %2541 = vmatprep.subr.mxu0 0.0
    %2542 = vmatpush1.msra.mxu0 %v2520
    %2543 = vmatprep.subr.mxu0 0.0
    %2544 = vmatpush1.msra.mxu0 %v2521
    %2545 = vmatprep.subr.mxu0 0.0
    %2546 = vmatpush1.msra.mxu0 %v2522
    %2547 = vmatprep.subr.mxu0 0.0
    %2548 = vmatpush1.msra.mxu0 %v2523
    %2549 = vmatprep.subr.mxu0 0.0
    %2550 = vmatpush1.msra.mxu0 0.0
    %2551 = vmatprep.subr.mxu0 0.0
    %2552 = vmatpush1.msra.mxu0 0.0
    %2553 = vmatprep.subr.mxu0 0.0
    %2554 = vmatpush1.msra.mxu0 0.0
    %2555 = vmatprep.subr.mxu0 0.0
    %2556 = vmatpush1.msra.mxu0 0.0
    %2557 = vmatprep.subr.mxu0 0.0
    %2558 = vmatpush1.msra.mxu0 0.0
    %2559 = vmatprep.subr.mxu0 0.0
    %2560 = vmatpush1.msra.mxu0 0.0
    %2561 = vmatprep.subr.mxu0 0.0
    %2562 = vmatpush1.msra.mxu0 0.0
    %2563 = vmatprep.subr.mxu0 0.0
    %2564 = vmatpush1.msra.mxu0 0.0
    %2565 = vmatprep.subr.mxu0 0.0
    %2566 = vmatpush1.msra.mxu0 0.0
    %2567 = vmatprep.subr.mxu0 0.0
    %2568 = vmatpush1.msra.mxu0 0.0
    %2569 = vmatprep.subr.mxu0 0.0
    %2570 = vmatpush1.msra.mxu0 0.0
    %2571 = vmatprep.subr.mxu0 0.0
    %2572 = vmatpush1.msra.mxu0 0.0
    %2573 = vmatprep.subr.mxu0 0.0
    %2574 = vmatpush1.msra.mxu0 0.0
    %2575 = vmatprep.subr.mxu0 0.0
    %2576 = vmatpush1.msra.mxu0 0.0
    %2577 = vmatprep.subr.mxu0 0.0
    %2578 = vmatpush1.msra.mxu0 0.0
    %2579 = vmatprep.subr.mxu0 0.0
    %2580 = vmatpush1.msra.mxu0 0.0
    %2581 = vmatprep.subr.mxu0 0.0
    %2582 = vmatpush1.msra.mxu0 0.0
    %2583 = vmatprep.subr.mxu0 0.0
    %2584 = vmatpush1.msra.mxu0 0.0
    %2585 = vmatprep.subr.mxu0 0.0
    %2586 = vmatpush1.msra.mxu0 0.0
    %2587 = vmatprep.subr.mxu0 0.0
    %2588 = vmatpush1.msra.mxu0 0.0
    %2589 = vmatprep.subr.mxu0 0.0
    %2590 = vmatpush1.msra.mxu0 0.0
    %2591 = vmatprep.subr.mxu0 0.0
    %2592 = vmatpush1.msra.mxu0 0.0
    %2593 = vmatprep.subr.mxu0 0.0
    %2594 = vmatpush1.msra.mxu0 0.0
    %2595 = vmatprep.subr.mxu0 0.0
    %2596 = vmatpush1.msra.mxu0 0.0
    %2597 = vmatprep.subr.mxu0 0.0
    %2598 = vmatpush1.msra.mxu0 0.0
    %2599 = vmatprep.subr.mxu0 0.0
    %2600 = vmatpush1.msra.mxu0 0.0
    %2601 = vmatprep.subr.mxu0 0.0
    %2602 = vmatpush1.msra.mxu0 0.0
    %2603 = vmatprep.subr.mxu0 0.0
    %2604 = vmatpush1.msra.mxu0 0.0
    %2605 = vmatprep.mubr.f32.mxu0 0.0
    %2606 = vmatmul.mubr.f32.gmra.mrb[0].mxu0 %v2537
    %v2607 = vpop.f32.mrb[0].mxu0
    %v2608 = vadd.f32 %v2529, %v2607
    %v2609 = vpop.f32.mrb[0].mxu0
    %2610 = vmatprep.mubr.f32.mxu0 0.0
    %2611 = vmatmul.mubr.f32.gmra.mrb[0].mxu0 %v2539
    %v2612 = vpop.f32.mrb[0].mxu0
    %v2613 = vadd.f32 %v2529, %v2612
    %v2614 = vpop.f32.mrb[0].mxu0
    %2615 = vdwg.mxu0
    %vm2616 = vcmask 15360
    %2617 = vst.msk [vmem:[%s9] sm:$0xff] %vm2616, %v2608
    %2618 = vst.msk [vmem:[%s9 + $0x8] sm:$0xff] %vm2616, %v2613
    // Predicated region
    $region42: #{rnn_lstm_forward.1} parent=1 // pred_check
      _
    $region43: #{rnn_lstm_forward.1} parent=1 // pred_check_branch
      %2620 = sbr.rel (0) target = $region45
    $region44: #{rnn_lstm_forward.1} parent=1 // pred_region
      _
    $region45: #{rnn_lstm_forward.1} parent=1 // pred_fallthru
      _
    // Predicated region
    $region46: #{rnn_lstm_forward.1} parent=1 // pred_check
      _
    $region47: #{rnn_lstm_forward.1} parent=1 // pred_check_branch
      %2622 = sbr.rel (0) target = $region49
    $region48: #{rnn_lstm_forward.1} parent=1 // pred_region
      _
    $region49: #{rnn_lstm_forward.1} parent=1 // pred_fallthru
      _
    %2623 = vsyncpa [#allocation3], 1

</llo_original>
